<compile_context>
chip_gen: v5e
topology: v5e:2x2
jax: 0.10.0
libtpu: 0.0.40
codegen_flags: <defaults>
</compile_context>

<pallas_src>
import math
import functools

import jax
import jax.numpy as jnp
from jax import lax
from jax.experimental import pallas as pl
from jax.experimental.pallas import tpu as pltpu


_NEG = -1e30  # large finite negative instead of -inf (avoids inf-inf -> NaN)


def _layernorm(v, w, b, eps=1e-5):
    mu = jnp.mean(v, axis=-1, keepdims=True)
    var = jnp.mean(jnp.square(v - mu), axis=-1, keepdims=True)
    return (v - mu) * lax.rsqrt(var + eps) * w + b


def next_head_kernel(x_ref, pe_ref,
                     inw_ref, inb_ref, outw_ref, outb_ref,
                     w1_ref, b1_ref, w2_ref, b2_ref,
                     n1w_ref, n1b_ref, n2w_ref, n2b_ref,
                     lnw_ref, lnb_ref, srw_ref, srb_ref,
                     cw_ref, cb_ref, o_ref,
                     *, num_layers, num_heads):
    f32, bf16 = jnp.float32, jnp.bfloat16
    x = x_ref[...]                                    # (Bt, S, E) f32
    Bt, S, E = x.shape
    H = num_heads
    Dh = E // H
    N = Bt * S
    Z = H * Bt

    # --- padding mask from the raw input (row is all zeros) -----------------
    padf = (jnp.sum(jnp.abs(x), axis=-1, keepdims=True) == 0.0).astype(f32)  # (Bt,S,1)

    # --- positional encoding (dropout == identity at inference), fused mask -
    keep = (1.0 - padf) + 1e-12
    x = (x + pe_ref[...][None]) * keep                # == x*keep + pe*keep

    # --- attention biases, generated in-kernel, hoisted out of the layer loop
    qi = lax.broadcasted_iota(jnp.int32, (S, S), 0)
    ki = lax.broadcasted_iota(jnp.int32, (S, S), 1)
    causal = jnp.where(ki <= qi, 0.0, _NEG).astype(f32)[None]        # (1,S,S)
    pad_k = padf.reshape(Bt, 1, S) * _NEG                            # (Bt,1,S)
    # replicate key-padding bias over heads (z = h*Bt + b), tiny (Z,1,S) array
    pad_kz = jnp.broadcast_to(pad_k[None], (H, Bt, 1, S)).reshape(Z, 1, S)

    x2 = x.reshape(N, E)                              # folded (Bt*S, E) activations

    def to_heads(t):                                  # (N, E) -> (Z, S, Dh)
        # head split: the single lane->batch relayout per operand
        th = jnp.stack([t[:, h * Dh:(h + 1) * Dh] for h in range(H)], axis=0)  # (H,N,Dh)
        return th.reshape(Z, S, Dh)                   # pure outer-dim regroup

    def layer_step(l, x2):
        # ------------------ self-attention (norm_first) ---------------------
        xn = _layernorm(x2, n1w_ref[l], n1b_ref[l])
        qkv = jnp.dot(xn.astype(bf16), inw_ref[l],
                      preferred_element_type=f32) + inb_ref[l]       # (N, 3E)
        qh = to_heads(qkv[:, 0 * E:1 * E]).astype(bf16)              # (Z,S,Dh)
        kh = to_heads(qkv[:, 1 * E:2 * E]).astype(bf16)
        vh = to_heads(qkv[:, 2 * E:3 * E]).astype(bf16)

        # per-sequence scores: (Z,S,S) -- NOT the folded (H, Bt*S, Bt*S) slab.
        # 1/sqrt(Dh) is already folded into the Q projection weights.
        s = jnp.einsum('zqd,zkd->zqk', qh, kh, preferred_element_type=f32)
        s = s + causal + pad_kz
        m = jnp.max(s, axis=-1, keepdims=True)
        ex = jnp.exp(s - m)
        p = ex * pl.reciprocal(jnp.sum(ex, axis=-1, keepdims=True), approx=True)

        oh = jnp.einsum('zqk,zkd->zqd', p.astype(bf16), vh,
                        preferred_element_type=f32)                  # (Z,S,Dh)
        # merge heads back to (N, E) (single relayout) -> ONE K=E projection
        oh = oh.reshape(H, N, Dh)
        cat = jnp.concatenate([oh[h] for h in range(H)], axis=-1)    # (N, E)
        att = jnp.dot(cat.astype(bf16), outw_ref[l],
                      preferred_element_type=f32) + outb_ref[l]
        x2 = x2 + att

        # ------------------ feed-forward -------------------------------------
        xn = _layernorm(x2, n2w_ref[l], n2b_ref[l])
        h1 = jnp.dot(xn.astype(bf16), w1_ref[l],
                     preferred_element_type=f32) + b1_ref[l]
        h1 = jnp.maximum(h1, 0.0)                                    # ReLU
        ff = jnp.dot(h1.astype(bf16), w2_ref[l],
                     preferred_element_type=f32) + b2_ref[l]
        return x2 + ff

    if num_layers <= 4:
        # small L: static unroll gives the scheduler full visibility
        for l in range(num_layers):
            x2 = layer_step(l, x2)
    else:
        # large L: bound live ranges / code size with a real loop
        x2 = lax.fori_loop(0, num_layers, layer_step, x2)

    # ---------------- final LayerNorm ---------------------------------------
    xf = _layernorm(x2, lnw_ref[...], lnb_ref[...])                  # (N,E)

    # ---------------- attention pooling (per sequence) ------------------------
    logits = jnp.sum(xf * srw_ref[...], axis=-1, keepdims=True) + srb_ref[...]  # (N,1)
    logits = logits.reshape(Bt, S, 1) + padf * _NEG
    m = jnp.max(logits, axis=1, keepdims=True)
    ex = jnp.exp(logits - m)
    wts = ex * pl.reciprocal(jnp.sum(ex, axis=1, keepdims=True), approx=True)   # (Bt,S,1)
    wts = wts * (1.0 - padf)       # all-padding sequence -> 0 weights (torch nan_to_num)
    pooled = jnp.sum(xf.reshape(Bt, S, E) * wts, axis=1)             # (Bt,E)

    # ---------------- classifier (lane-dense padded output) -------------------
    out = jnp.dot(pooled.astype(bf16), cw_ref[...],
                  preferred_element_type=f32) + cb_ref[...]          # (Bt,Cp)
    o_ref[...] = out.reshape(o_ref.shape)


def init_params(key, E, H, S, L, C):
    """Deterministic parameter init in the PyTorch (out_features, in_features) convention."""
    ks = jax.random.split(key, 12)
    sc = 0.02

    def nrm(k, shape):
        return jax.random.normal(k, shape, jnp.float32) * sc

    params = dict(
        in_w=nrm(ks[0], (L, 3 * E, E)),       # MHA in_proj_weight
        in_b=nrm(ks[1], (L, 1, 3 * E)),
        out_w=nrm(ks[2], (L, E, E)),          # MHA out_proj
        out_b=nrm(ks[3], (L, 1, E)),
        w1=nrm(ks[4], (L, 4 * E, E)),         # FFN linear1
        b1=nrm(ks[5], (L, 1, 4 * E)),
        w2=nrm(ks[6], (L, E, 4 * E)),         # FFN linear2
        b2=nrm(ks[7], (L, 1, E)),
        n1_w=jnp.ones((L, 1, E), jnp.float32),
        n1_b=jnp.zeros((L, 1, E), jnp.float32),
        n2_w=jnp.ones((L, 1, E), jnp.float32),
        n2_b=jnp.zeros((L, 1, E), jnp.float32),
        ln_w=jnp.ones((1, E), jnp.float32),
        ln_b=jnp.zeros((1, E), jnp.float32),
        sr_w=nrm(ks[8], (1, E)),              # sequence_reduction
        sr_b=nrm(ks[9], (1, 1)),
        cls_w=nrm(ks[10], (C, E)),            # classifier
        cls_b=nrm(ks[11], (1, C)),
    )

    # Sinusoidal positional encoding, max_seq_length == seq_length.
    pos = jnp.arange(S, dtype=jnp.float32)[:, None]
    div = jnp.exp(jnp.arange(0, E, 2, dtype=jnp.float32) * (-math.log(10000.0) / E))
    pe = jnp.zeros((S, E), jnp.float32)
    pe = pe.at[:, 0::2].set(jnp.sin(pos * div))
    pe = pe.at[:, 1::2].set(jnp.cos(pos * div))
    params["pe"] = pe
    return params


def _choose_num_blocks(B, S, target_rows=1024):
    """Number of grid steps: keep Bt*S within a VMEM-friendly row budget and,
    when B >= 2, an even number of steps so both v7x TensorCores get work."""
    if B <= 1:
        return 1
    nb = 2
    while nb < B and (-(-B // nb)) * S > target_rows:
        nb += 2
    return nb


def next_head_single(x, params, *, num_heads, num_blocks=None, target_rows=1024):
    B, S, E = x.shape
    L = params["in_w"].shape[0]
    C = params["cls_w"].shape[0]
    H = num_heads
    Dh = E // H
    bf16 = jnp.bfloat16

    # --- batch blocking (tunable): each step runs a folded (Bt*S, E) slab ---
    if num_blocks is None:
        num_blocks = _choose_num_blocks(B, S, target_rows)
    Bt = -(-B // num_blocks)
    Bp = num_blocks * Bt
    if Bp != B:
        # zero rows are treated as padding inside the kernel and sliced off after
        x = jnp.concatenate([x, jnp.zeros((Bp - B, S, E), x.dtype)], axis=0)

    # --- weights: pre-transposed; 1/sqrt(Dh) folded into the Q projection;
    #     MXU operands pre-cast to bf16 (all host-side, free) ---
    scale = 1.0 / math.sqrt(Dh)
    in_w = params["in_w"].at[:, :E, :].multiply(scale)                 # scale Q rows
    in_b = params["in_b"].at[:, :, :E].multiply(scale)                 # scale Q bias
    in_w_t = jnp.transpose(in_w, (0, 2, 1)).astype(bf16)               # (L,E,3E)
    out_w_t = jnp.transpose(params["out_w"], (0, 2, 1)).astype(bf16)   # (L,E,E)
    w1_t = jnp.transpose(params["w1"], (0, 2, 1)).astype(bf16)         # (L,E,4E)
    w2_t = jnp.transpose(params["w2"], (0, 2, 1)).astype(bf16)         # (L,4E,E)

    # classifier padded to a lane-dense multiple of 128 (sliced back after)
    Cp = ((C + 127) // 128) * 128
    cls_w_t = jnp.zeros((E, Cp), jnp.float32).at[:, :C].set(params["cls_w"].T).astype(bf16)
    cls_b_p = jnp.zeros((1, Cp), jnp.float32).at[:, :C].set(params["cls_b"])

    kernel = functools.partial(next_head_kernel, num_layers=L, num_heads=H)

    args = (
        x, params["pe"],
        in_w_t, in_b, out_w_t, params["out_b"],
        w1_t, params["b1"], w2_t, params["b2"],
        params["n1_w"], params["n1_b"], params["n2_w"], params["n2_b"],
        params["ln_w"], params["ln_b"], params["sr_w"], params["sr_b"],
        cls_w_t, cls_b_p,
    )

    def resident_spec(a):
        # Grid-invariant weights/constants: constant index map (fetched once),
        # single-buffered -> halves their VMEM residency vs default pipelining.
        nd = a.ndim
        return pl.BlockSpec(a.shape, lambda b, nd=nd: (0,) * nd,
                            pipeline_mode=pl.Buffered(1))

    in_specs = [pl.BlockSpec((Bt, S, E), lambda b: (b, 0, 0))]          # activations
    in_specs += [resident_spec(a) for a in args[1:]]                    # weights/constants

    # TODO(synk): for very large L*E^2 (e.g. E>=768, L>=8 on v7x's 64 MiB VMEM)
    # stream per-layer weights (extra 'arbitrary' grid axis or manual
    # pltpu.make_async_copy double-buffer) instead of keeping all L layers resident.
    out = pl.pallas_call(
        kernel,
        out_shape=jax.ShapeDtypeStruct((num_blocks, Bt, Cp), jnp.float32),
        grid=(num_blocks,),
        in_specs=in_specs,
        out_specs=pl.BlockSpec((1, Bt, Cp), lambda b: (b, 0, 0)),
        compiler_params=pltpu.CompilerParams(
            dimension_semantics=("parallel",),
            vmem_limit_bytes=64 * 1024 * 1024,
        ),
    )(*args)
    return out.reshape(Bp, Cp)[:B, :C]


if __name__ == "__main__":
    # small shapes consistent with the module's forward
    B, S, E, H, L, C = 2, 8, 32, 4, 2, 5
    key = jax.random.PRNGKey(0)
    kx, kp = jax.random.split(key)
    x = jax.random.normal(kx, (B, S, E), dtype=jnp.float32)

    params = init_params(kp, E, H, S, L, C)
    out = next_head_single(x, params, num_heads=H)
    out = jax.block_until_ready(out)

    assert out.shape == (B, C), out.shape
    assert bool(jnp.all(jnp.isfinite(out)))
    print("KERNEL_OK")
</pallas_src>

<mosaic_0001>
module attributes {stable_mosaic.version = 11 : i64} {
  func.func @next_head_kernel(%arg0: i32, %arg1: memref<1x8x32xf32, #tpu.memory_space<vmem>>, %arg2: memref<8x32xf32, #tpu.memory_space<vmem>>, %arg3: memref<2x32x96xbf16, #tpu.memory_space<vmem>>, %arg4: memref<2x1x96xf32, #tpu.memory_space<vmem>>, %arg5: memref<2x32x32xbf16, #tpu.memory_space<vmem>>, %arg6: memref<2x1x32xf32, #tpu.memory_space<vmem>>, %arg7: memref<2x32x128xbf16, #tpu.memory_space<vmem>>, %arg8: memref<2x1x128xf32, #tpu.memory_space<vmem>>, %arg9: memref<2x128x32xbf16, #tpu.memory_space<vmem>>, %arg10: memref<2x1x32xf32, #tpu.memory_space<vmem>>, %arg11: memref<2x1x32xf32, #tpu.memory_space<vmem>>, %arg12: memref<2x1x32xf32, #tpu.memory_space<vmem>>, %arg13: memref<2x1x32xf32, #tpu.memory_space<vmem>>, %arg14: memref<2x1x32xf32, #tpu.memory_space<vmem>>, %arg15: memref<1x32xf32, #tpu.memory_space<vmem>>, %arg16: memref<1x32xf32, #tpu.memory_space<vmem>>, %arg17: memref<1x32xf32, #tpu.memory_space<vmem>>, %arg18: memref<1x1xf32, #tpu.memory_space<vmem>>, %arg19: memref<32x128xbf16, #tpu.memory_space<vmem>>, %arg20: memref<1x128xf32, #tpu.memory_space<vmem>>, %arg21: memref<1x1x128xf32, #tpu.memory_space<vmem>>) attributes {dimension_semantics = [#tpu.dimension_semantics<parallel>], iteration_bounds = array<i64: 2>, scalar_prefetch = 0 : i64, scratch_operands = 0 : i64, tpu.core_type = #tpu.core_type<tc>, window_params = [{transform_indices = @transform_0, window_bounds = array<i64: 1, 8, 32>}, {pipeline_mode = #tpu.pipeline_mode<synchronous>, transform_indices = @transform_1, window_bounds = array<i64: 8, 32>}, {pipeline_mode = #tpu.pipeline_mode<synchronous>, transform_indices = @transform_2, window_bounds = array<i64: 2, 32, 96>}, {pipeline_mode = #tpu.pipeline_mode<synchronous>, transform_indices = @transform_3, window_bounds = array<i64: 2, 1, 96>}, {pipeline_mode = #tpu.pipeline_mode<synchronous>, transform_indices = @transform_4, window_bounds = array<i64: 2, 32, 32>}, {pipeline_mode = #tpu.pipeline_mode<synchronous>, transform_indices = @transform_5, window_bounds = array<i64: 2, 1, 32>}, {pipeline_mode = #tpu.pipeline_mode<synchronous>, transform_indices = @transform_6, window_bounds = array<i64: 2, 32, 128>}, {pipeline_mode = #tpu.pipeline_mode<synchronous>, transform_indices = @transform_7, window_bounds = array<i64: 2, 1, 128>}, {pipeline_mode = #tpu.pipeline_mode<synchronous>, transform_indices = @transform_8, window_bounds = array<i64: 2, 128, 32>}, {pipeline_mode = #tpu.pipeline_mode<synchronous>, transform_indices = @transform_9, window_bounds = array<i64: 2, 1, 32>}, {pipeline_mode = #tpu.pipeline_mode<synchronous>, transform_indices = @transform_10, window_bounds = array<i64: 2, 1, 32>}, {pipeline_mode = #tpu.pipeline_mode<synchronous>, transform_indices = @transform_11, window_bounds = array<i64: 2, 1, 32>}, {pipeline_mode = #tpu.pipeline_mode<synchronous>, transform_indices = @transform_12, window_bounds = array<i64: 2, 1, 32>}, {pipeline_mode = #tpu.pipeline_mode<synchronous>, transform_indices = @transform_13, window_bounds = array<i64: 2, 1, 32>}, {pipeline_mode = #tpu.pipeline_mode<synchronous>, transform_indices = @transform_14, window_bounds = array<i64: 1, 32>}, {pipeline_mode = #tpu.pipeline_mode<synchronous>, transform_indices = @transform_15, window_bounds = array<i64: 1, 32>}, {pipeline_mode = #tpu.pipeline_mode<synchronous>, transform_indices = @transform_16, window_bounds = array<i64: 1, 32>}, {pipeline_mode = #tpu.pipeline_mode<synchronous>, transform_indices = @transform_17, window_bounds = array<i64: 1, 1>}, {pipeline_mode = #tpu.pipeline_mode<synchronous>, transform_indices = @transform_18, window_bounds = array<i64: 32, 128>}, {pipeline_mode = #tpu.pipeline_mode<synchronous>, transform_indices = @transform_19, window_bounds = array<i64: 1, 128>}, {transform_indices = @transform_20, window_bounds = array<i64: 1, 1, 128>}]} {
    %c0 = arith.constant 0 : index
    %c0_0 = arith.constant 0 : index
    %c0_1 = arith.constant 0 : index
    %0 = vector.load %arg1[%c0, %c0_0, %c0_1] : memref<1x8x32xf32, #tpu.memory_space<vmem>>, vector<1x8x32xf32>
    %1 = math.absf %0 : vector<1x8x32xf32>
    %cst = arith.constant dense<0.000000e+00> : vector<1x8xf32>
    %2 = vector.multi_reduction <add>, %1, %cst [2] : vector<1x8x32xf32> to vector<1x8xf32>
    %3 = vector.shape_cast %2 : vector<1x8xf32> to vector<1x8x1xf32>
    %cst_2 = arith.constant 0.000000e+00 : f32
    %4 = vector.broadcast %cst_2 : f32 to vector<1x8x1xf32>
    %5 = arith.cmpf oeq, %3, %4 : vector<1x8x1xf32>
    %6 = arith.extui %5 : vector<1x8x1xi1> to vector<1x8x1xi32>
    %7 = arith.sitofp %6 : vector<1x8x1xi32> to vector<1x8x1xf32>
    %cst_3 = arith.constant 1.000000e+00 : f32
    %8 = vector.broadcast %cst_3 : f32 to vector<1x8x1xf32>
    %9 = arith.subf %8, %7 : vector<1x8x1xf32>
    %cst_4 = arith.constant 9.99999996E-13 : f32
    %10 = vector.broadcast %cst_4 : f32 to vector<1x8x1xf32>
    %11 = arith.addf %9, %10 : vector<1x8x1xf32>
    %c0_5 = arith.constant 0 : index
    %c0_6 = arith.constant 0 : index
    %12 = vector.load %arg2[%c0_5, %c0_6] : memref<8x32xf32, #tpu.memory_space<vmem>>, vector<8x32xf32>
    %13 = vector.shape_cast %12 : vector<8x32xf32> to vector<1x8x32xf32>
    %14 = arith.addf %0, %13 : vector<1x8x32xf32>
    %15 = vector.broadcast %11 : vector<1x8x1xf32> to vector<1x8x32xf32>
    %16 = arith.mulf %14, %15 : vector<1x8x32xf32>
    %17 = tpu.iota {dimensions = array<i32: 0>} : vector<8x8xi32>
    %18 = tpu.iota {dimensions = array<i32: 1>} : vector<8x8xi32>
    %19 = arith.cmpi sle, %18, %17 : vector<8x8xi32>
    %cst_7 = arith.constant 0.000000e+00 : f32
    %cst_8 = arith.constant -1.000000e+30 : f32
    %20 = vector.broadcast %cst_7 : f32 to vector<8x8xf32>
    %21 = vector.broadcast %cst_8 : f32 to vector<8x8xf32>
    %22 = arith.select %19, %20, %21 : vector<8x8xi1>, vector<8x8xf32>
    %23 = vector.shape_cast %22 : vector<8x8xf32> to vector<1x8x8xf32>
    %24 = vector.shape_cast %7 : vector<1x8x1xf32> to vector<1x1x8xf32>
    %cst_9 = arith.constant -1.000000e+30 : f32
    %25 = vector.broadcast %cst_9 : f32 to vector<1x1x8xf32>
    %26 = arith.mulf %24, %25 : vector<1x1x8xf32>
    %27 = vector.shape_cast %26 : vector<1x1x8xf32> to vector<1x1x1x8xf32>
    %28 = vector.shape_cast %27 : vector<1x1x1x8xf32> to vector<1x1x1x8xf32>
    %29 = vector.broadcast %28 : vector<1x1x1x8xf32> to vector<4x1x1x8xf32>
    %30 = vector.shape_cast %29 : vector<4x1x1x8xf32> to vector<4x1x8xf32>
    %31 = vector.shape_cast %16 : vector<1x8x32xf32> to vector<8x32xf32>
    %c0_10 = arith.constant 0 : index
    %c0_11 = arith.constant 0 : index
    %c0_12 = arith.constant 0 : index
    %32 = vector.load %arg11[%c0_10, %c0_11, %c0_12] : memref<2x1x32xf32, #tpu.memory_space<vmem>>, vector<1x1x32xf32>
    %33 = vector.shape_cast %32 : vector<1x1x32xf32> to vector<1x32xf32>
    %c0_13 = arith.constant 0 : index
    %c0_14 = arith.constant 0 : index
    %c0_15 = arith.constant 0 : index
    %34 = vector.load %arg12[%c0_13, %c0_14, %c0_15] : memref<2x1x32xf32, #tpu.memory_space<vmem>>, vector<1x1x32xf32>
    %35 = vector.shape_cast %34 : vector<1x1x32xf32> to vector<1x32xf32>
    %cst_16 = arith.constant dense<0.000000e+00> : vector<8xf32>
    %36 = vector.multi_reduction <add>, %31, %cst_16 [1] : vector<8x32xf32> to vector<8xf32>
    %37 = vector.shape_cast %36 : vector<8xf32> to vector<8x1xf32>
    %cst_17 = arith.constant 3.200000e+01 : f32
    %38 = vector.broadcast %cst_17 : f32 to vector<8x1xf32>
    %39 = arith.divf %37, %38 : vector<8x1xf32>
    %40 = vector.broadcast %39 : vector<8x1xf32> to vector<8x32xf32>
    %41 = arith.subf %31, %40 : vector<8x32xf32>
    %42 = arith.mulf %41, %41 : vector<8x32xf32>
    %cst_18 = arith.constant dense<0.000000e+00> : vector<8xf32>
    %43 = vector.multi_reduction <add>, %42, %cst_18 [1] : vector<8x32xf32> to vector<8xf32>
    %44 = vector.shape_cast %43 : vector<8xf32> to vector<8x1xf32>
    %cst_19 = arith.constant 3.200000e+01 : f32
    %45 = vector.broadcast %cst_19 : f32 to vector<8x1xf32>
    %46 = arith.divf %44, %45 : vector<8x1xf32>
    %47 = vector.broadcast %39 : vector<8x1xf32> to vector<8x32xf32>
    %48 = arith.subf %31, %47 : vector<8x32xf32>
    %cst_20 = arith.constant 9.99999974E-6 : f32
    %49 = vector.broadcast %cst_20 : f32 to vector<8x1xf32>
    %50 = arith.addf %46, %49 : vector<8x1xf32>
    %51 = math.rsqrt %50 : vector<8x1xf32>
    %52 = vector.broadcast %51 : vector<8x1xf32> to vector<8x32xf32>
    %53 = arith.mulf %48, %52 : vector<8x32xf32>
    %54 = vector.broadcast %33 : vector<1x32xf32> to vector<8x32xf32>
    %55 = arith.mulf %53, %54 : vector<8x32xf32>
    %56 = vector.broadcast %35 : vector<1x32xf32> to vector<8x32xf32>
    %57 = arith.addf %55, %56 : vector<8x32xf32>
    %58 = arith.truncf %57 : vector<8x32xf32> to vector<8x32xbf16>
    %c0_21 = arith.constant 0 : index
    %c0_22 = arith.constant 0 : index
    %c0_23 = arith.constant 0 : index
    %59 = vector.load %arg3[%c0_21, %c0_22, %c0_23] : memref<2x32x96xbf16, #tpu.memory_space<vmem>>, vector<1x32x96xbf16>
    %60 = vector.shape_cast %59 : vector<1x32x96xbf16> to vector<32x96xbf16>
    %cst_24 = arith.constant dense<0.000000e+00> : vector<8x96xf32>
    %61 = tpu.matmul %58, %60, %cst_24 {dimension_numbers = #tpu.dot_dimension_numbers<[1], [0], [0], [1], [0, 0, 1, 1], [], []>} : vector<8x32xbf16>, vector<32x96xbf16>, vector<8x96xf32> -> vector<8x96xf32>
    %c0_25 = arith.constant 0 : index
    %c0_26 = arith.constant 0 : index
    %c0_27 = arith.constant 0 : index
    %62 = vector.load %arg4[%c0_25, %c0_26, %c0_27] : memref<2x1x96xf32, #tpu.memory_space<vmem>>, vector<1x1x96xf32>
    %63 = vector.shape_cast %62 : vector<1x1x96xf32> to vector<1x96xf32>
    %64 = vector.broadcast %63 : vector<1x96xf32> to vector<8x96xf32>
    %65 = arith.addf %61, %64 : vector<8x96xf32>
    %66 = vector.extract_strided_slice %65 {offsets = [0, 0], sizes = [8, 32], strides = [1, 1]} : vector<8x96xf32> to vector<8x32xf32>
    %67 = vector.extract_strided_slice %66 {offsets = [0, 0], sizes = [8, 8], strides = [1, 1]} : vector<8x32xf32> to vector<8x8xf32>
    %68 = vector.extract_strided_slice %66 {offsets = [0, 8], sizes = [8, 8], strides = [1, 1]} : vector<8x32xf32> to vector<8x8xf32>
    %69 = vector.extract_strided_slice %66 {offsets = [0, 16], sizes = [8, 8], strides = [1, 1]} : vector<8x32xf32> to vector<8x8xf32>
    %70 = vector.extract_strided_slice %66 {offsets = [0, 24], sizes = [8, 8], strides = [1, 1]} : vector<8x32xf32> to vector<8x8xf32>
    %71 = vector.shape_cast %67 : vector<8x8xf32> to vector<1x8x8xf32>
    %72 = vector.shape_cast %68 : vector<8x8xf32> to vector<1x8x8xf32>
    %73 = vector.shape_cast %69 : vector<8x8xf32> to vector<1x8x8xf32>
    %74 = vector.shape_cast %70 : vector<8x8xf32> to vector<1x8x8xf32>
    %75 = tpu.concatenate %71, %72, %73, %74 in 0 : vector<1x8x8xf32>, vector<1x8x8xf32>, vector<1x8x8xf32>, vector<1x8x8xf32> -> vector<4x8x8xf32>
    %76 = arith.truncf %75 : vector<4x8x8xf32> to vector<4x8x8xbf16>
    %77 = vector.extract_strided_slice %65 {offsets = [0, 32], sizes = [8, 32], strides = [1, 1]} : vector<8x96xf32> to vector<8x32xf32>
    %78 = vector.extract_strided_slice %77 {offsets = [0, 0], sizes = [8, 8], strides = [1, 1]} : vector<8x32xf32> to vector<8x8xf32>
    %79 = vector.extract_strided_slice %77 {offsets = [0, 8], sizes = [8, 8], strides = [1, 1]} : vector<8x32xf32> to vector<8x8xf32>
    %80 = vector.extract_strided_slice %77 {offsets = [0, 16], sizes = [8, 8], strides = [1, 1]} : vector<8x32xf32> to vector<8x8xf32>
    %81 = vector.extract_strided_slice %77 {offsets = [0, 24], sizes = [8, 8], strides = [1, 1]} : vector<8x32xf32> to vector<8x8xf32>
    %82 = vector.shape_cast %78 : vector<8x8xf32> to vector<1x8x8xf32>
    %83 = vector.shape_cast %79 : vector<8x8xf32> to vector<1x8x8xf32>
    %84 = vector.shape_cast %80 : vector<8x8xf32> to vector<1x8x8xf32>
    %85 = vector.shape_cast %81 : vector<8x8xf32> to vector<1x8x8xf32>
    %86 = tpu.concatenate %82, %83, %84, %85 in 0 : vector<1x8x8xf32>, vector<1x8x8xf32>, vector<1x8x8xf32>, vector<1x8x8xf32> -> vector<4x8x8xf32>
    %87 = arith.truncf %86 : vector<4x8x8xf32> to vector<4x8x8xbf16>
    %88 = vector.extract_strided_slice %65 {offsets = [0, 64], sizes = [8, 32], strides = [1, 1]} : vector<8x96xf32> to vector<8x32xf32>
    %89 = vector.extract_strided_slice %88 {offsets = [0, 0], sizes = [8, 8], strides = [1, 1]} : vector<8x32xf32> to vector<8x8xf32>
    %90 = vector.extract_strided_slice %88 {offsets = [0, 8], sizes = [8, 8], strides = [1, 1]} : vector<8x32xf32> to vector<8x8xf32>
    %91 = vector.extract_strided_slice %88 {offsets = [0, 16], sizes = [8, 8], strides = [1, 1]} : vector<8x32xf32> to vector<8x8xf32>
    %92 = vector.extract_strided_slice %88 {offsets = [0, 24], sizes = [8, 8], strides = [1, 1]} : vector<8x32xf32> to vector<8x8xf32>
    %93 = vector.shape_cast %89 : vector<8x8xf32> to vector<1x8x8xf32>
    %94 = vector.shape_cast %90 : vector<8x8xf32> to vector<1x8x8xf32>
    %95 = vector.shape_cast %91 : vector<8x8xf32> to vector<1x8x8xf32>
    %96 = vector.shape_cast %92 : vector<8x8xf32> to vector<1x8x8xf32>
    %97 = tpu.concatenate %93, %94, %95, %96 in 0 : vector<1x8x8xf32>, vector<1x8x8xf32>, vector<1x8x8xf32>, vector<1x8x8xf32> -> vector<4x8x8xf32>
    %98 = arith.truncf %97 : vector<4x8x8xf32> to vector<4x8x8xbf16>
    "tpu.trace_start"() <{level = 10 : i32, message = "zqd,zkd->zqk"}> : () -> ()
    %cst_28 = arith.constant dense<0.000000e+00> : vector<4x8x8xf32>
    %99 = tpu.matmul %76, %87, %cst_28 {dimension_numbers = #tpu.dot_dimension_numbers<[2], [2], [1], [1], [0, 0, 0, 1, 1, 1], [0], [0]>} : vector<4x8x8xbf16>, vector<4x8x8xbf16>, vector<4x8x8xf32> -> vector<4x8x8xf32>
    "tpu.trace_stop"() : () -> ()
    %100 = vector.broadcast %23 : vector<1x8x8xf32> to vector<4x8x8xf32>
    %101 = arith.addf %99, %100 : vector<4x8x8xf32>
    %102 = vector.broadcast %30 : vector<4x1x8xf32> to vector<4x8x8xf32>
    %103 = arith.addf %101, %102 : vector<4x8x8xf32>
    %cst_29 = arith.constant dense<0xFF800000> : vector<4x8xf32>
    %104 = vector.multi_reduction <maximumf>, %103, %cst_29 [2] : vector<4x8x8xf32> to vector<4x8xf32>
    %105 = vector.shape_cast %104 : vector<4x8xf32> to vector<4x8x1xf32>
    %106 = vector.broadcast %105 : vector<4x8x1xf32> to vector<4x8x8xf32>
    %107 = arith.subf %103, %106 : vector<4x8x8xf32>
    %108 = math.exp %107 : vector<4x8x8xf32>
    %cst_30 = arith.constant dense<0.000000e+00> : vector<4x8xf32>
    %109 = vector.multi_reduction <add>, %108, %cst_30 [2] : vector<4x8x8xf32> to vector<4x8xf32>
    %110 = vector.shape_cast %109 : vector<4x8xf32> to vector<4x8x1xf32>
    %111 = tpu.reciprocal %110 {approx = true} : vector<4x8x1xf32> -> vector<4x8x1xf32>
    %112 = vector.broadcast %111 : vector<4x8x1xf32> to vector<4x8x8xf32>
    %113 = arith.mulf %108, %112 : vector<4x8x8xf32>
    %114 = arith.truncf %113 : vector<4x8x8xf32> to vector<4x8x8xbf16>
    "tpu.trace_start"() <{level = 10 : i32, message = "zqk,zkd->zqd"}> : () -> ()
    %cst_31 = arith.constant dense<0.000000e+00> : vector<4x8x8xf32>
    %115 = tpu.matmul %114, %98, %cst_31 {dimension_numbers = #tpu.dot_dimension_numbers<[2], [1], [1], [2], [0, 0, 0, 1, 1, 2], [0], [0]>} : vector<4x8x8xbf16>, vector<4x8x8xbf16>, vector<4x8x8xf32> -> vector<4x8x8xf32>
    "tpu.trace_stop"() : () -> ()
    %116 = vector.extract_strided_slice %115 {offsets = [0, 0, 0], sizes = [1, 8, 8], strides = [1, 1, 1]} : vector<4x8x8xf32> to vector<1x8x8xf32>
    %117 = vector.shape_cast %116 : vector<1x8x8xf32> to vector<8x8xf32>
    %118 = vector.extract_strided_slice %115 {offsets = [1, 0, 0], sizes = [1, 8, 8], strides = [1, 1, 1]} : vector<4x8x8xf32> to vector<1x8x8xf32>
    %119 = vector.shape_cast %118 : vector<1x8x8xf32> to vector<8x8xf32>
    %120 = vector.extract_strided_slice %115 {offsets = [2, 0, 0], sizes = [1, 8, 8], strides = [1, 1, 1]} : vector<4x8x8xf32> to vector<1x8x8xf32>
    %121 = vector.shape_cast %120 : vector<1x8x8xf32> to vector<8x8xf32>
    %122 = vector.extract_strided_slice %115 {offsets = [3, 0, 0], sizes = [1, 8, 8], strides = [1, 1, 1]} : vector<4x8x8xf32> to vector<1x8x8xf32>
    %123 = vector.shape_cast %122 : vector<1x8x8xf32> to vector<8x8xf32>
    %124 = tpu.concatenate %117, %119, %121, %123 in 1 : vector<8x8xf32>, vector<8x8xf32>, vector<8x8xf32>, vector<8x8xf32> -> vector<8x32xf32>
    %125 = arith.truncf %124 : vector<8x32xf32> to vector<8x32xbf16>
    %c0_32 = arith.constant 0 : index
    %c0_33 = arith.constant 0 : index
    %c0_34 = arith.constant 0 : index
    %126 = vector.load %arg5[%c0_32, %c0_33, %c0_34] : memref<2x32x32xbf16, #tpu.memory_space<vmem>>, vector<1x32x32xbf16>
    %127 = vector.shape_cast %126 : vector<1x32x32xbf16> to vector<32x32xbf16>
    %cst_35 = arith.constant dense<0.000000e+00> : vector<8x32xf32>
    %128 = tpu.matmul %125, %127, %cst_35 {dimension_numbers = #tpu.dot_dimension_numbers<[1], [0], [0], [1], [0, 0, 1, 1], [], []>} : vector<8x32xbf16>, vector<32x32xbf16>, vector<8x32xf32> -> vector<8x32xf32>
    %c0_36 = arith.constant 0 : index
    %c0_37 = arith.constant 0 : index
    %c0_38 = arith.constant 0 : index
    %129 = vector.load %arg6[%c0_36, %c0_37, %c0_38] : memref<2x1x32xf32, #tpu.memory_space<vmem>>, vector<1x1x32xf32>
    %130 = vector.shape_cast %129 : vector<1x1x32xf32> to vector<1x32xf32>
    %131 = vector.broadcast %130 : vector<1x32xf32> to vector<8x32xf32>
    %132 = arith.addf %128, %131 : vector<8x32xf32>
    %133 = arith.addf %31, %132 : vector<8x32xf32>
    %c0_39 = arith.constant 0 : index
    %c0_40 = arith.constant 0 : index
    %c0_41 = arith.constant 0 : index
    %134 = vector.load %arg13[%c0_39, %c0_40, %c0_41] : memref<2x1x32xf32, #tpu.memory_space<vmem>>, vector<1x1x32xf32>
    %135 = vector.shape_cast %134 : vector<1x1x32xf32> to vector<1x32xf32>
    %c0_42 = arith.constant 0 : index
    %c0_43 = arith.constant 0 : index
    %c0_44 = arith.constant 0 : index
    %136 = vector.load %arg14[%c0_42, %c0_43, %c0_44] : memref<2x1x32xf32, #tpu.memory_space<vmem>>, vector<1x1x32xf32>
    %137 = vector.shape_cast %136 : vector<1x1x32xf32> to vector<1x32xf32>
    %cst_45 = arith.constant dense<0.000000e+00> : vector<8xf32>
    %138 = vector.multi_reduction <add>, %133, %cst_45 [1] : vector<8x32xf32> to vector<8xf32>
    %139 = vector.shape_cast %138 : vector<8xf32> to vector<8x1xf32>
    %cst_46 = arith.constant 3.200000e+01 : f32
    %140 = vector.broadcast %cst_46 : f32 to vector<8x1xf32>
    %141 = arith.divf %139, %140 : vector<8x1xf32>
    %142 = vector.broadcast %141 : vector<8x1xf32> to vector<8x32xf32>
    %143 = arith.subf %133, %142 : vector<8x32xf32>
    %144 = arith.mulf %143, %143 : vector<8x32xf32>
    %cst_47 = arith.constant dense<0.000000e+00> : vector<8xf32>
    %145 = vector.multi_reduction <add>, %144, %cst_47 [1] : vector<8x32xf32> to vector<8xf32>
    %146 = vector.shape_cast %145 : vector<8xf32> to vector<8x1xf32>
    %cst_48 = arith.constant 3.200000e+01 : f32
    %147 = vector.broadcast %cst_48 : f32 to vector<8x1xf32>
    %148 = arith.divf %146, %147 : vector<8x1xf32>
    %149 = vector.broadcast %141 : vector<8x1xf32> to vector<8x32xf32>
    %150 = arith.subf %133, %149 : vector<8x32xf32>
    %cst_49 = arith.constant 9.99999974E-6 : f32
    %151 = vector.broadcast %cst_49 : f32 to vector<8x1xf32>
    %152 = arith.addf %148, %151 : vector<8x1xf32>
    %153 = math.rsqrt %152 : vector<8x1xf32>
    %154 = vector.broadcast %153 : vector<8x1xf32> to vector<8x32xf32>
    %155 = arith.mulf %150, %154 : vector<8x32xf32>
    %156 = vector.broadcast %135 : vector<1x32xf32> to vector<8x32xf32>
    %157 = arith.mulf %155, %156 : vector<8x32xf32>
    %158 = vector.broadcast %137 : vector<1x32xf32> to vector<8x32xf32>
    %159 = arith.addf %157, %158 : vector<8x32xf32>
    %160 = arith.truncf %159 : vector<8x32xf32> to vector<8x32xbf16>
    %c0_50 = arith.constant 0 : index
    %c0_51 = arith.constant 0 : index
    %c0_52 = arith.constant 0 : index
    %161 = vector.load %arg7[%c0_50, %c0_51, %c0_52] : memref<2x32x128xbf16, #tpu.memory_space<vmem>>, vector<1x32x128xbf16>
    %162 = vector.shape_cast %161 : vector<1x32x128xbf16> to vector<32x128xbf16>
    %cst_53 = arith.constant dense<0.000000e+00> : vector<8x128xf32>
    %163 = tpu.matmul %160, %162, %cst_53 {dimension_numbers = #tpu.dot_dimension_numbers<[1], [0], [0], [1], [0, 0, 1, 1], [], []>} : vector<8x32xbf16>, vector<32x128xbf16>, vector<8x128xf32> -> vector<8x128xf32>
    %c0_54 = arith.constant 0 : index
    %c0_55 = arith.constant 0 : index
    %c0_56 = arith.constant 0 : index
    %164 = vector.load %arg8[%c0_54, %c0_55, %c0_56] : memref<2x1x128xf32, #tpu.memory_space<vmem>>, vector<1x1x128xf32>
    %165 = vector.shape_cast %164 : vector<1x1x128xf32> to vector<1x128xf32>
    %166 = vector.broadcast %165 : vector<1x128xf32> to vector<8x128xf32>
    %167 = arith.addf %163, %166 : vector<8x128xf32>
    %cst_57 = arith.constant 0.000000e+00 : f32
    %168 = vector.broadcast %cst_57 : f32 to vector<8x128xf32>
    %169 = arith.maximumf %167, %168 : vector<8x128xf32>
    %170 = arith.truncf %169 : vector<8x128xf32> to vector<8x128xbf16>
    %c0_58 = arith.constant 0 : index
    %c0_59 = arith.constant 0 : index
    %c0_60 = arith.constant 0 : index
    %171 = vector.load %arg9[%c0_58, %c0_59, %c0_60] : memref<2x128x32xbf16, #tpu.memory_space<vmem>>, vector<1x128x32xbf16>
    %172 = vector.shape_cast %171 : vector<1x128x32xbf16> to vector<128x32xbf16>
    %cst_61 = arith.constant dense<0.000000e+00> : vector<8x32xf32>
    %173 = tpu.matmul %170, %172, %cst_61 {dimension_numbers = #tpu.dot_dimension_numbers<[1], [0], [0], [1], [0, 0, 1, 1], [], []>} : vector<8x128xbf16>, vector<128x32xbf16>, vector<8x32xf32> -> vector<8x32xf32>
    %c0_62 = arith.constant 0 : index
    %c0_63 = arith.constant 0 : index
    %c0_64 = arith.constant 0 : index
    %174 = vector.load %arg10[%c0_62, %c0_63, %c0_64] : memref<2x1x32xf32, #tpu.memory_space<vmem>>, vector<1x1x32xf32>
    %175 = vector.shape_cast %174 : vector<1x1x32xf32> to vector<1x32xf32>
    %176 = vector.broadcast %175 : vector<1x32xf32> to vector<8x32xf32>
    %177 = arith.addf %173, %176 : vector<8x32xf32>
    %178 = arith.addf %133, %177 : vector<8x32xf32>
    %c1 = arith.constant 1 : index
    %c0_65 = arith.constant 0 : index
    %c0_66 = arith.constant 0 : index
    %179 = vector.load %arg11[%c1, %c0_65, %c0_66] : memref<2x1x32xf32, #tpu.memory_space<vmem>>, vector<1x1x32xf32>
    %180 = vector.shape_cast %179 : vector<1x1x32xf32> to vector<1x32xf32>
    %c1_67 = arith.constant 1 : index
    %c0_68 = arith.constant 0 : index
    %c0_69 = arith.constant 0 : index
    %181 = vector.load %arg12[%c1_67, %c0_68, %c0_69] : memref<2x1x32xf32, #tpu.memory_space<vmem>>, vector<1x1x32xf32>
    %182 = vector.shape_cast %181 : vector<1x1x32xf32> to vector<1x32xf32>
    %cst_70 = arith.constant dense<0.000000e+00> : vector<8xf32>
    %183 = vector.multi_reduction <add>, %178, %cst_70 [1] : vector<8x32xf32> to vector<8xf32>
    %184 = vector.shape_cast %183 : vector<8xf32> to vector<8x1xf32>
    %cst_71 = arith.constant 3.200000e+01 : f32
    %185 = vector.broadcast %cst_71 : f32 to vector<8x1xf32>
    %186 = arith.divf %184, %185 : vector<8x1xf32>
    %187 = vector.broadcast %186 : vector<8x1xf32> to vector<8x32xf32>
    %188 = arith.subf %178, %187 : vector<8x32xf32>
    %189 = arith.mulf %188, %188 : vector<8x32xf32>
    %cst_72 = arith.constant dense<0.000000e+00> : vector<8xf32>
    %190 = vector.multi_reduction <add>, %189, %cst_72 [1] : vector<8x32xf32> to vector<8xf32>
    %191 = vector.shape_cast %190 : vector<8xf32> to vector<8x1xf32>
    %cst_73 = arith.constant 3.200000e+01 : f32
    %192 = vector.broadcast %cst_73 : f32 to vector<8x1xf32>
    %193 = arith.divf %191, %192 : vector<8x1xf32>
    %194 = vector.broadcast %186 : vector<8x1xf32> to vector<8x32xf32>
    %195 = arith.subf %178, %194 : vector<8x32xf32>
    %cst_74 = arith.constant 9.99999974E-6 : f32
    %196 = vector.broadcast %cst_74 : f32 to vector<8x1xf32>
    %197 = arith.addf %193, %196 : vector<8x1xf32>
    %198 = math.rsqrt %197 : vector<8x1xf32>
    %199 = vector.broadcast %198 : vector<8x1xf32> to vector<8x32xf32>
    %200 = arith.mulf %195, %199 : vector<8x32xf32>
    %201 = vector.broadcast %180 : vector<1x32xf32> to vector<8x32xf32>
    %202 = arith.mulf %200, %201 : vector<8x32xf32>
    %203 = vector.broadcast %182 : vector<1x32xf32> to vector<8x32xf32>
    %204 = arith.addf %202, %203 : vector<8x32xf32>
    %205 = arith.truncf %204 : vector<8x32xf32> to vector<8x32xbf16>
    %c1_75 = arith.constant 1 : index
    %c0_76 = arith.constant 0 : index
    %c0_77 = arith.constant 0 : index
    %206 = vector.load %arg3[%c1_75, %c0_76, %c0_77] : memref<2x32x96xbf16, #tpu.memory_space<vmem>>, vector<1x32x96xbf16>
    %207 = vector.shape_cast %206 : vector<1x32x96xbf16> to vector<32x96xbf16>
    %cst_78 = arith.constant dense<0.000000e+00> : vector<8x96xf32>
    %208 = tpu.matmul %205, %207, %cst_78 {dimension_numbers = #tpu.dot_dimension_numbers<[1], [0], [0], [1], [0, 0, 1, 1], [], []>} : vector<8x32xbf16>, vector<32x96xbf16>, vector<8x96xf32> -> vector<8x96xf32>
    %c1_79 = arith.constant 1 : index
    %c0_80 = arith.constant 0 : index
    %c0_81 = arith.constant 0 : index
    %209 = vector.load %arg4[%c1_79, %c0_80, %c0_81] : memref<2x1x96xf32, #tpu.memory_space<vmem>>, vector<1x1x96xf32>
    %210 = vector.shape_cast %209 : vector<1x1x96xf32> to vector<1x96xf32>
    %211 = vector.broadcast %210 : vector<1x96xf32> to vector<8x96xf32>
    %212 = arith.addf %208, %211 : vector<8x96xf32>
    %213 = vector.extract_strided_slice %212 {offsets = [0, 0], sizes = [8, 32], strides = [1, 1]} : vector<8x96xf32> to vector<8x32xf32>
    %214 = vector.extract_strided_slice %213 {offsets = [0, 0], sizes = [8, 8], strides = [1, 1]} : vector<8x32xf32> to vector<8x8xf32>
    %215 = vector.extract_strided_slice %213 {offsets = [0, 8], sizes = [8, 8], strides = [1, 1]} : vector<8x32xf32> to vector<8x8xf32>
    %216 = vector.extract_strided_slice %213 {offsets = [0, 16], sizes = [8, 8], strides = [1, 1]} : vector<8x32xf32> to vector<8x8xf32>
    %217 = vector.extract_strided_slice %213 {offsets = [0, 24], sizes = [8, 8], strides = [1, 1]} : vector<8x32xf32> to vector<8x8xf32>
    %218 = vector.shape_cast %214 : vector<8x8xf32> to vector<1x8x8xf32>
    %219 = vector.shape_cast %215 : vector<8x8xf32> to vector<1x8x8xf32>
    %220 = vector.shape_cast %216 : vector<8x8xf32> to vector<1x8x8xf32>
    %221 = vector.shape_cast %217 : vector<8x8xf32> to vector<1x8x8xf32>
    %222 = tpu.concatenate %218, %219, %220, %221 in 0 : vector<1x8x8xf32>, vector<1x8x8xf32>, vector<1x8x8xf32>, vector<1x8x8xf32> -> vector<4x8x8xf32>
    %223 = arith.truncf %222 : vector<4x8x8xf32> to vector<4x8x8xbf16>
    %224 = vector.extract_strided_slice %212 {offsets = [0, 32], sizes = [8, 32], strides = [1, 1]} : vector<8x96xf32> to vector<8x32xf32>
    %225 = vector.extract_strided_slice %224 {offsets = [0, 0], sizes = [8, 8], strides = [1, 1]} : vector<8x32xf32> to vector<8x8xf32>
    %226 = vector.extract_strided_slice %224 {offsets = [0, 8], sizes = [8, 8], strides = [1, 1]} : vector<8x32xf32> to vector<8x8xf32>
    %227 = vector.extract_strided_slice %224 {offsets = [0, 16], sizes = [8, 8], strides = [1, 1]} : vector<8x32xf32> to vector<8x8xf32>
    %228 = vector.extract_strided_slice %224 {offsets = [0, 24], sizes = [8, 8], strides = [1, 1]} : vector<8x32xf32> to vector<8x8xf32>
    %229 = vector.shape_cast %225 : vector<8x8xf32> to vector<1x8x8xf32>
    %230 = vector.shape_cast %226 : vector<8x8xf32> to vector<1x8x8xf32>
    %231 = vector.shape_cast %227 : vector<8x8xf32> to vector<1x8x8xf32>
    %232 = vector.shape_cast %228 : vector<8x8xf32> to vector<1x8x8xf32>
    %233 = tpu.concatenate %229, %230, %231, %232 in 0 : vector<1x8x8xf32>, vector<1x8x8xf32>, vector<1x8x8xf32>, vector<1x8x8xf32> -> vector<4x8x8xf32>
    %234 = arith.truncf %233 : vector<4x8x8xf32> to vector<4x8x8xbf16>
    %235 = vector.extract_strided_slice %212 {offsets = [0, 64], sizes = [8, 32], strides = [1, 1]} : vector<8x96xf32> to vector<8x32xf32>
    %236 = vector.extract_strided_slice %235 {offsets = [0, 0], sizes = [8, 8], strides = [1, 1]} : vector<8x32xf32> to vector<8x8xf32>
    %237 = vector.extract_strided_slice %235 {offsets = [0, 8], sizes = [8, 8], strides = [1, 1]} : vector<8x32xf32> to vector<8x8xf32>
    %238 = vector.extract_strided_slice %235 {offsets = [0, 16], sizes = [8, 8], strides = [1, 1]} : vector<8x32xf32> to vector<8x8xf32>
    %239 = vector.extract_strided_slice %235 {offsets = [0, 24], sizes = [8, 8], strides = [1, 1]} : vector<8x32xf32> to vector<8x8xf32>
    %240 = vector.shape_cast %236 : vector<8x8xf32> to vector<1x8x8xf32>
    %241 = vector.shape_cast %237 : vector<8x8xf32> to vector<1x8x8xf32>
    %242 = vector.shape_cast %238 : vector<8x8xf32> to vector<1x8x8xf32>
    %243 = vector.shape_cast %239 : vector<8x8xf32> to vector<1x8x8xf32>
    %244 = tpu.concatenate %240, %241, %242, %243 in 0 : vector<1x8x8xf32>, vector<1x8x8xf32>, vector<1x8x8xf32>, vector<1x8x8xf32> -> vector<4x8x8xf32>
    %245 = arith.truncf %244 : vector<4x8x8xf32> to vector<4x8x8xbf16>
    "tpu.trace_start"() <{level = 10 : i32, message = "zqd,zkd->zqk"}> : () -> ()
    %cst_82 = arith.constant dense<0.000000e+00> : vector<4x8x8xf32>
    %246 = tpu.matmul %223, %234, %cst_82 {dimension_numbers = #tpu.dot_dimension_numbers<[2], [2], [1], [1], [0, 0, 0, 1, 1, 1], [0], [0]>} : vector<4x8x8xbf16>, vector<4x8x8xbf16>, vector<4x8x8xf32> -> vector<4x8x8xf32>
    "tpu.trace_stop"() : () -> ()
    %247 = vector.broadcast %23 : vector<1x8x8xf32> to vector<4x8x8xf32>
    %248 = arith.addf %246, %247 : vector<4x8x8xf32>
    %249 = vector.broadcast %30 : vector<4x1x8xf32> to vector<4x8x8xf32>
    %250 = arith.addf %248, %249 : vector<4x8x8xf32>
    %cst_83 = arith.constant dense<0xFF800000> : vector<4x8xf32>
    %251 = vector.multi_reduction <maximumf>, %250, %cst_83 [2] : vector<4x8x8xf32> to vector<4x8xf32>
    %252 = vector.shape_cast %251 : vector<4x8xf32> to vector<4x8x1xf32>
    %253 = vector.broadcast %252 : vector<4x8x1xf32> to vector<4x8x8xf32>
    %254 = arith.subf %250, %253 : vector<4x8x8xf32>
    %255 = math.exp %254 : vector<4x8x8xf32>
    %cst_84 = arith.constant dense<0.000000e+00> : vector<4x8xf32>
    %256 = vector.multi_reduction <add>, %255, %cst_84 [2] : vector<4x8x8xf32> to vector<4x8xf32>
    %257 = vector.shape_cast %256 : vector<4x8xf32> to vector<4x8x1xf32>
    %258 = tpu.reciprocal %257 {approx = true} : vector<4x8x1xf32> -> vector<4x8x1xf32>
    %259 = vector.broadcast %258 : vector<4x8x1xf32> to vector<4x8x8xf32>
    %260 = arith.mulf %255, %259 : vector<4x8x8xf32>
    %261 = arith.truncf %260 : vector<4x8x8xf32> to vector<4x8x8xbf16>
    "tpu.trace_start"() <{level = 10 : i32, message = "zqk,zkd->zqd"}> : () -> ()
    %cst_85 = arith.constant dense<0.000000e+00> : vector<4x8x8xf32>
    %262 = tpu.matmul %261, %245, %cst_85 {dimension_numbers = #tpu.dot_dimension_numbers<[2], [1], [1], [2], [0, 0, 0, 1, 1, 2], [0], [0]>} : vector<4x8x8xbf16>, vector<4x8x8xbf16>, vector<4x8x8xf32> -> vector<4x8x8xf32>
    "tpu.trace_stop"() : () -> ()
    %263 = vector.extract_strided_slice %262 {offsets = [0, 0, 0], sizes = [1, 8, 8], strides = [1, 1, 1]} : vector<4x8x8xf32> to vector<1x8x8xf32>
    %264 = vector.shape_cast %263 : vector<1x8x8xf32> to vector<8x8xf32>
    %265 = vector.extract_strided_slice %262 {offsets = [1, 0, 0], sizes = [1, 8, 8], strides = [1, 1, 1]} : vector<4x8x8xf32> to vector<1x8x8xf32>
    %266 = vector.shape_cast %265 : vector<1x8x8xf32> to vector<8x8xf32>
    %267 = vector.extract_strided_slice %262 {offsets = [2, 0, 0], sizes = [1, 8, 8], strides = [1, 1, 1]} : vector<4x8x8xf32> to vector<1x8x8xf32>
    %268 = vector.shape_cast %267 : vector<1x8x8xf32> to vector<8x8xf32>
    %269 = vector.extract_strided_slice %262 {offsets = [3, 0, 0], sizes = [1, 8, 8], strides = [1, 1, 1]} : vector<4x8x8xf32> to vector<1x8x8xf32>
    %270 = vector.shape_cast %269 : vector<1x8x8xf32> to vector<8x8xf32>
    %271 = tpu.concatenate %264, %266, %268, %270 in 1 : vector<8x8xf32>, vector<8x8xf32>, vector<8x8xf32>, vector<8x8xf32> -> vector<8x32xf32>
    %272 = arith.truncf %271 : vector<8x32xf32> to vector<8x32xbf16>
    %c1_86 = arith.constant 1 : index
    %c0_87 = arith.constant 0 : index
    %c0_88 = arith.constant 0 : index
    %273 = vector.load %arg5[%c1_86, %c0_87, %c0_88] : memref<2x32x32xbf16, #tpu.memory_space<vmem>>, vector<1x32x32xbf16>
    %274 = vector.shape_cast %273 : vector<1x32x32xbf16> to vector<32x32xbf16>
    %cst_89 = arith.constant dense<0.000000e+00> : vector<8x32xf32>
    %275 = tpu.matmul %272, %274, %cst_89 {dimension_numbers = #tpu.dot_dimension_numbers<[1], [0], [0], [1], [0, 0, 1, 1], [], []>} : vector<8x32xbf16>, vector<32x32xbf16>, vector<8x32xf32> -> vector<8x32xf32>
    %c1_90 = arith.constant 1 : index
    %c0_91 = arith.constant 0 : index
    %c0_92 = arith.constant 0 : index
    %276 = vector.load %arg6[%c1_90, %c0_91, %c0_92] : memref<2x1x32xf32, #tpu.memory_space<vmem>>, vector<1x1x32xf32>
    %277 = vector.shape_cast %276 : vector<1x1x32xf32> to vector<1x32xf32>
    %278 = vector.broadcast %277 : vector<1x32xf32> to vector<8x32xf32>
    %279 = arith.addf %275, %278 : vector<8x32xf32>
    %280 = arith.addf %178, %279 : vector<8x32xf32>
    %c1_93 = arith.constant 1 : index
    %c0_94 = arith.constant 0 : index
    %c0_95 = arith.constant 0 : index
    %281 = vector.load %arg13[%c1_93, %c0_94, %c0_95] : memref<2x1x32xf32, #tpu.memory_space<vmem>>, vector<1x1x32xf32>
    %282 = vector.shape_cast %281 : vector<1x1x32xf32> to vector<1x32xf32>
    %c1_96 = arith.constant 1 : index
    %c0_97 = arith.constant 0 : index
    %c0_98 = arith.constant 0 : index
    %283 = vector.load %arg14[%c1_96, %c0_97, %c0_98] : memref<2x1x32xf32, #tpu.memory_space<vmem>>, vector<1x1x32xf32>
    %284 = vector.shape_cast %283 : vector<1x1x32xf32> to vector<1x32xf32>
    %cst_99 = arith.constant dense<0.000000e+00> : vector<8xf32>
    %285 = vector.multi_reduction <add>, %280, %cst_99 [1] : vector<8x32xf32> to vector<8xf32>
    %286 = vector.shape_cast %285 : vector<8xf32> to vector<8x1xf32>
    %cst_100 = arith.constant 3.200000e+01 : f32
    %287 = vector.broadcast %cst_100 : f32 to vector<8x1xf32>
    %288 = arith.divf %286, %287 : vector<8x1xf32>
    %289 = vector.broadcast %288 : vector<8x1xf32> to vector<8x32xf32>
    %290 = arith.subf %280, %289 : vector<8x32xf32>
    %291 = arith.mulf %290, %290 : vector<8x32xf32>
    %cst_101 = arith.constant dense<0.000000e+00> : vector<8xf32>
    %292 = vector.multi_reduction <add>, %291, %cst_101 [1] : vector<8x32xf32> to vector<8xf32>
    %293 = vector.shape_cast %292 : vector<8xf32> to vector<8x1xf32>
    %cst_102 = arith.constant 3.200000e+01 : f32
    %294 = vector.broadcast %cst_102 : f32 to vector<8x1xf32>
    %295 = arith.divf %293, %294 : vector<8x1xf32>
    %296 = vector.broadcast %288 : vector<8x1xf32> to vector<8x32xf32>
    %297 = arith.subf %280, %296 : vector<8x32xf32>
    %cst_103 = arith.constant 9.99999974E-6 : f32
    %298 = vector.broadcast %cst_103 : f32 to vector<8x1xf32>
    %299 = arith.addf %295, %298 : vector<8x1xf32>
    %300 = math.rsqrt %299 : vector<8x1xf32>
    %301 = vector.broadcast %300 : vector<8x1xf32> to vector<8x32xf32>
    %302 = arith.mulf %297, %301 : vector<8x32xf32>
    %303 = vector.broadcast %282 : vector<1x32xf32> to vector<8x32xf32>
    %304 = arith.mulf %302, %303 : vector<8x32xf32>
    %305 = vector.broadcast %284 : vector<1x32xf32> to vector<8x32xf32>
    %306 = arith.addf %304, %305 : vector<8x32xf32>
    %307 = arith.truncf %306 : vector<8x32xf32> to vector<8x32xbf16>
    %c1_104 = arith.constant 1 : index
    %c0_105 = arith.constant 0 : index
    %c0_106 = arith.constant 0 : index
    %308 = vector.load %arg7[%c1_104, %c0_105, %c0_106] : memref<2x32x128xbf16, #tpu.memory_space<vmem>>, vector<1x32x128xbf16>
    %309 = vector.shape_cast %308 : vector<1x32x128xbf16> to vector<32x128xbf16>
    %cst_107 = arith.constant dense<0.000000e+00> : vector<8x128xf32>
    %310 = tpu.matmul %307, %309, %cst_107 {dimension_numbers = #tpu.dot_dimension_numbers<[1], [0], [0], [1], [0, 0, 1, 1], [], []>} : vector<8x32xbf16>, vector<32x128xbf16>, vector<8x128xf32> -> vector<8x128xf32>
    %c1_108 = arith.constant 1 : index
    %c0_109 = arith.constant 0 : index
    %c0_110 = arith.constant 0 : index
    %311 = vector.load %arg8[%c1_108, %c0_109, %c0_110] : memref<2x1x128xf32, #tpu.memory_space<vmem>>, vector<1x1x128xf32>
    %312 = vector.shape_cast %311 : vector<1x1x128xf32> to vector<1x128xf32>
    %313 = vector.broadcast %312 : vector<1x128xf32> to vector<8x128xf32>
    %314 = arith.addf %310, %313 : vector<8x128xf32>
    %cst_111 = arith.constant 0.000000e+00 : f32
    %315 = vector.broadcast %cst_111 : f32 to vector<8x128xf32>
    %316 = arith.maximumf %314, %315 : vector<8x128xf32>
    %317 = arith.truncf %316 : vector<8x128xf32> to vector<8x128xbf16>
    %c1_112 = arith.constant 1 : index
    %c0_113 = arith.constant 0 : index
    %c0_114 = arith.constant 0 : index
    %318 = vector.load %arg9[%c1_112, %c0_113, %c0_114] : memref<2x128x32xbf16, #tpu.memory_space<vmem>>, vector<1x128x32xbf16>
    %319 = vector.shape_cast %318 : vector<1x128x32xbf16> to vector<128x32xbf16>
    %cst_115 = arith.constant dense<0.000000e+00> : vector<8x32xf32>
    %320 = tpu.matmul %317, %319, %cst_115 {dimension_numbers = #tpu.dot_dimension_numbers<[1], [0], [0], [1], [0, 0, 1, 1], [], []>} : vector<8x128xbf16>, vector<128x32xbf16>, vector<8x32xf32> -> vector<8x32xf32>
    %c1_116 = arith.constant 1 : index
    %c0_117 = arith.constant 0 : index
    %c0_118 = arith.constant 0 : index
    %321 = vector.load %arg10[%c1_116, %c0_117, %c0_118] : memref<2x1x32xf32, #tpu.memory_space<vmem>>, vector<1x1x32xf32>
    %322 = vector.shape_cast %321 : vector<1x1x32xf32> to vector<1x32xf32>
    %323 = vector.broadcast %322 : vector<1x32xf32> to vector<8x32xf32>
    %324 = arith.addf %320, %323 : vector<8x32xf32>
    %325 = arith.addf %280, %324 : vector<8x32xf32>
    %c0_119 = arith.constant 0 : index
    %c0_120 = arith.constant 0 : index
    %326 = vector.load %arg15[%c0_119, %c0_120] : memref<1x32xf32, #tpu.memory_space<vmem>>, vector<1x32xf32>
    %c0_121 = arith.constant 0 : index
    %c0_122 = arith.constant 0 : index
    %327 = vector.load %arg16[%c0_121, %c0_122] : memref<1x32xf32, #tpu.memory_space<vmem>>, vector<1x32xf32>
    %cst_123 = arith.constant dense<0.000000e+00> : vector<8xf32>
    %328 = vector.multi_reduction <add>, %325, %cst_123 [1] : vector<8x32xf32> to vector<8xf32>
    %329 = vector.shape_cast %328 : vector<8xf32> to vector<8x1xf32>
    %cst_124 = arith.constant 3.200000e+01 : f32
    %330 = vector.broadcast %cst_124 : f32 to vector<8x1xf32>
    %331 = arith.divf %329, %330 : vector<8x1xf32>
    %332 = vector.broadcast %331 : vector<8x1xf32> to vector<8x32xf32>
    %333 = arith.subf %325, %332 : vector<8x32xf32>
    %334 = arith.mulf %333, %333 : vector<8x32xf32>
    %cst_125 = arith.constant dense<0.000000e+00> : vector<8xf32>
    %335 = vector.multi_reduction <add>, %334, %cst_125 [1] : vector<8x32xf32> to vector<8xf32>
    %336 = vector.shape_cast %335 : vector<8xf32> to vector<8x1xf32>
    %cst_126 = arith.constant 3.200000e+01 : f32
    %337 = vector.broadcast %cst_126 : f32 to vector<8x1xf32>
    %338 = arith.divf %336, %337 : vector<8x1xf32>
    %339 = vector.broadcast %331 : vector<8x1xf32> to vector<8x32xf32>
    %340 = arith.subf %325, %339 : vector<8x32xf32>
    %cst_127 = arith.constant 9.99999974E-6 : f32
    %341 = vector.broadcast %cst_127 : f32 to vector<8x1xf32>
    %342 = arith.addf %338, %341 : vector<8x1xf32>
    %343 = math.rsqrt %342 : vector<8x1xf32>
    %344 = vector.broadcast %343 : vector<8x1xf32> to vector<8x32xf32>
    %345 = arith.mulf %340, %344 : vector<8x32xf32>
    %346 = vector.broadcast %326 : vector<1x32xf32> to vector<8x32xf32>
    %347 = arith.mulf %345, %346 : vector<8x32xf32>
    %348 = vector.broadcast %327 : vector<1x32xf32> to vector<8x32xf32>
    %349 = arith.addf %347, %348 : vector<8x32xf32>
    %c0_128 = arith.constant 0 : index
    %c0_129 = arith.constant 0 : index
    %350 = vector.load %arg17[%c0_128, %c0_129] : memref<1x32xf32, #tpu.memory_space<vmem>>, vector<1x32xf32>
    %351 = vector.broadcast %350 : vector<1x32xf32> to vector<8x32xf32>
    %352 = arith.mulf %349, %351 : vector<8x32xf32>
    %cst_130 = arith.constant dense<0.000000e+00> : vector<8xf32>
    %353 = vector.multi_reduction <add>, %352, %cst_130 [1] : vector<8x32xf32> to vector<8xf32>
    %354 = vector.shape_cast %353 : vector<8xf32> to vector<8x1xf32>
    %c0_131 = arith.constant 0 : index
    %c0_132 = arith.constant 0 : index
    %355 = vector.load %arg18[%c0_131, %c0_132] : memref<1x1xf32, #tpu.memory_space<vmem>>, vector<1x1xf32>
    %356 = vector.broadcast %355 : vector<1x1xf32> to vector<8x1xf32>
    %357 = arith.addf %354, %356 : vector<8x1xf32>
    %358 = vector.shape_cast %357 : vector<8x1xf32> to vector<1x8x1xf32>
    %cst_133 = arith.constant -1.000000e+30 : f32
    %359 = vector.broadcast %cst_133 : f32 to vector<1x8x1xf32>
    %360 = arith.mulf %7, %359 : vector<1x8x1xf32>
    %361 = arith.addf %358, %360 : vector<1x8x1xf32>
    %cst_134 = arith.constant dense<0xFF800000> : vector<1x1xf32>
    %362 = vector.multi_reduction <maximumf>, %361, %cst_134 [1] : vector<1x8x1xf32> to vector<1x1xf32>
    %363 = vector.shape_cast %362 : vector<1x1xf32> to vector<1x1x1xf32>
    %364 = vector.broadcast %363 : vector<1x1x1xf32> to vector<1x8x1xf32>
    %365 = arith.subf %361, %364 : vector<1x8x1xf32>
    %366 = math.exp %365 : vector<1x8x1xf32>
    %cst_135 = arith.constant dense<0.000000e+00> : vector<1x1xf32>
    %367 = vector.multi_reduction <add>, %366, %cst_135 [1] : vector<1x8x1xf32> to vector<1x1xf32>
    %368 = vector.shape_cast %367 : vector<1x1xf32> to vector<1x1x1xf32>
    %369 = tpu.reciprocal %368 {approx = true} : vector<1x1x1xf32> -> vector<1x1x1xf32>
    %370 = vector.broadcast %369 : vector<1x1x1xf32> to vector<1x8x1xf32>
    %371 = arith.mulf %366, %370 : vector<1x8x1xf32>
    %cst_136 = arith.constant 1.000000e+00 : f32
    %372 = vector.broadcast %cst_136 : f32 to vector<1x8x1xf32>
    %373 = arith.subf %372, %7 : vector<1x8x1xf32>
    %374 = arith.mulf %371, %373 : vector<1x8x1xf32>
    %375 = vector.shape_cast %349 : vector<8x32xf32> to vector<1x8x32xf32>
    %376 = vector.broadcast %374 : vector<1x8x1xf32> to vector<1x8x32xf32>
    %377 = arith.mulf %375, %376 : vector<1x8x32xf32>
    %cst_137 = arith.constant dense<0.000000e+00> : vector<1x32xf32>
    %378 = vector.multi_reduction <add>, %377, %cst_137 [1] : vector<1x8x32xf32> to vector<1x32xf32>
    %379 = arith.truncf %378 : vector<1x32xf32> to vector<1x32xbf16>
    %c0_138 = arith.constant 0 : index
    %c0_139 = arith.constant 0 : index
    %380 = vector.load %arg19[%c0_138, %c0_139] : memref<32x128xbf16, #tpu.memory_space<vmem>>, vector<32x128xbf16>
    %cst_140 = arith.constant dense<0.000000e+00> : vector<1x128xf32>
    %381 = tpu.matmul %379, %380, %cst_140 {dimension_numbers = #tpu.dot_dimension_numbers<[1], [0], [0], [1], [0, 0, 1, 1], [], []>} : vector<1x32xbf16>, vector<32x128xbf16>, vector<1x128xf32> -> vector<1x128xf32>
    %c0_141 = arith.constant 0 : index
    %c0_142 = arith.constant 0 : index
    %382 = vector.load %arg20[%c0_141, %c0_142] : memref<1x128xf32, #tpu.memory_space<vmem>>, vector<1x128xf32>
    %383 = arith.addf %381, %382 : vector<1x128xf32>
    %384 = vector.shape_cast %383 : vector<1x128xf32> to vector<1x1x128xf32>
    %c0_143 = arith.constant 0 : index
    %c0_144 = arith.constant 0 : index
    %c0_145 = arith.constant 0 : index
    %385 = vector.load %arg21[%c0_143, %c0_144, %c0_145] : memref<1x1x128xf32, #tpu.memory_space<vmem>>, vector<1x1x128xf32>
    tpu.vector_store %arg21[%c0_143, %c0_144, %c0_145], %384 {strides = array<i32>} : memref<1x1x128xf32, #tpu.memory_space<vmem>>, vector<1x1x128xf32>,
    return
  }
  func.func @transform_0(%arg0: i32) -> (i32, i32, i32) {
    %c0_i32 = arith.constant 0 : i32
    %c0_i32_0 = arith.constant 0 : i32
    %c0_i32_1 = arith.constant 0 : i32
    return %arg0, %c0_i32, %c0_i32_0 : i32, i32, i32
  }
  func.func @transform_1(%arg0: i32) -> (i32, i32) {
    %c0_i32 = arith.constant 0 : i32
    %c0_i32_0 = arith.constant 0 : i32
    %c0_i32_1 = arith.constant 0 : i32
    return %c0_i32, %c0_i32_0 : i32, i32
  }
  func.func @transform_2(%arg0: i32) -> (i32, i32, i32) {
    %c0_i32 = arith.constant 0 : i32
    %c0_i32_0 = arith.constant 0 : i32
    %c0_i32_1 = arith.constant 0 : i32
    %c0_i32_2 = arith.constant 0 : i32
    return %c0_i32, %c0_i32_0, %c0_i32_1 : i32, i32, i32
  }
  func.func @transform_3(%arg0: i32) -> (i32, i32, i32) {
    %c0_i32 = arith.constant 0 : i32
    %c0_i32_0 = arith.constant 0 : i32
    %c0_i32_1 = arith.constant 0 : i32
    %c0_i32_2 = arith.constant 0 : i32
    return %c0_i32, %c0_i32_0, %c0_i32_1 : i32, i32, i32
  }
  func.func @transform_4(%arg0: i32) -> (i32, i32, i32) {
    %c0_i32 = arith.constant 0 : i32
    %c0_i32_0 = arith.constant 0 : i32
    %c0_i32_1 = arith.constant 0 : i32
    %c0_i32_2 = arith.constant 0 : i32
    return %c0_i32, %c0_i32_0, %c0_i32_1 : i32, i32, i32
  }
  func.func @transform_5(%arg0: i32) -> (i32, i32, i32) {
    %c0_i32 = arith.constant 0 : i32
    %c0_i32_0 = arith.constant 0 : i32
    %c0_i32_1 = arith.constant 0 : i32
    %c0_i32_2 = arith.constant 0 : i32
    return %c0_i32, %c0_i32_0, %c0_i32_1 : i32, i32, i32
  }
  func.func @transform_6(%arg0: i32) -> (i32, i32, i32) {
    %c0_i32 = arith.constant 0 : i32
    %c0_i32_0 = arith.constant 0 : i32
    %c0_i32_1 = arith.constant 0 : i32
    %c0_i32_2 = arith.constant 0 : i32
    return %c0_i32, %c0_i32_0, %c0_i32_1 : i32, i32, i32
  }
  func.func @transform_7(%arg0: i32) -> (i32, i32, i32) {
    %c0_i32 = arith.constant 0 : i32
    %c0_i32_0 = arith.constant 0 : i32
    %c0_i32_1 = arith.constant 0 : i32
    %c0_i32_2 = arith.constant 0 : i32
    return %c0_i32, %c0_i32_0, %c0_i32_1 : i32, i32, i32
  }
  func.func @transform_8(%arg0: i32) -> (i32, i32, i32) {
    %c0_i32 = arith.constant 0 : i32
    %c0_i32_0 = arith.constant 0 : i32
    %c0_i32_1 = arith.constant 0 : i32
    %c0_i32_2 = arith.constant 0 : i32
    return %c0_i32, %c0_i32_0, %c0_i32_1 : i32, i32, i32
  }
  func.func @transform_9(%arg0: i32) -> (i32, i32, i32) {
    %c0_i32 = arith.constant 0 : i32
    %c0_i32_0 = arith.constant 0 : i32
    %c0_i32_1 = arith.constant 0 : i32
    %c0_i32_2 = arith.constant 0 : i32
    return %c0_i32, %c0_i32_0, %c0_i32_1 : i32, i32, i32
  }
  func.func @transform_10(%arg0: i32) -> (i32, i32, i32) {
    %c0_i32 = arith.constant 0 : i32
    %c0_i32_0 = arith.constant 0 : i32
    %c0_i32_1 = arith.constant 0 : i32
    %c0_i32_2 = arith.constant 0 : i32
    return %c0_i32, %c0_i32_0, %c0_i32_1 : i32, i32, i32
  }
  func.func @transform_11(%arg0: i32) -> (i32, i32, i32) {
    %c0_i32 = arith.constant 0 : i32
    %c0_i32_0 = arith.constant 0 : i32
    %c0_i32_1 = arith.constant 0 : i32
    %c0_i32_2 = arith.constant 0 : i32
    return %c0_i32, %c0_i32_0, %c0_i32_1 : i32, i32, i32
  }
  func.func @transform_12(%arg0: i32) -> (i32, i32, i32) {
    %c0_i32 = arith.constant 0 : i32
    %c0_i32_0 = arith.constant 0 : i32
    %c0_i32_1 = arith.constant 0 : i32
    %c0_i32_2 = arith.constant 0 : i32
    return %c0_i32, %c0_i32_0, %c0_i32_1 : i32, i32, i32
  }
  func.func @transform_13(%arg0: i32) -> (i32, i32, i32) {
    %c0_i32 = arith.constant 0 : i32
    %c0_i32_0 = arith.constant 0 : i32
    %c0_i32_1 = arith.constant 0 : i32
    %c0_i32_2 = arith.constant 0 : i32
    return %c0_i32, %c0_i32_0, %c0_i32_1 : i32, i32, i32
  }
  func.func @transform_14(%arg0: i32) -> (i32, i32) {
    %c0_i32 = arith.constant 0 : i32
    %c0_i32_0 = arith.constant 0 : i32
    %c0_i32_1 = arith.constant 0 : i32
    return %c0_i32, %c0_i32_0 : i32, i32
  }
  func.func @transform_15(%arg0: i32) -> (i32, i32) {
    %c0_i32 = arith.constant 0 : i32
    %c0_i32_0 = arith.constant 0 : i32
    %c0_i32_1 = arith.constant 0 : i32
    return %c0_i32, %c0_i32_0 : i32, i32
  }
  func.func @transform_16(%arg0: i32) -> (i32, i32) {
    %c0_i32 = arith.constant 0 : i32
    %c0_i32_0 = arith.constant 0 : i32
    %c0_i32_1 = arith.constant 0 : i32
    return %c0_i32, %c0_i32_0 : i32, i32
  }
  func.func @transform_17(%arg0: i32) -> (i32, i32) {
    %c0_i32 = arith.constant 0 : i32
    %c0_i32_0 = arith.constant 0 : i32
    %c0_i32_1 = arith.constant 0 : i32
    return %c0_i32, %c0_i32_0 : i32, i32
  }
  func.func @transform_18(%arg0: i32) -> (i32, i32) {
    %c0_i32 = arith.constant 0 : i32
    %c0_i32_0 = arith.constant 0 : i32
    %c0_i32_1 = arith.constant 0 : i32
    return %c0_i32, %c0_i32_0 : i32, i32
  }
  func.func @transform_19(%arg0: i32) -> (i32, i32) {
    %c0_i32 = arith.constant 0 : i32
    %c0_i32_0 = arith.constant 0 : i32
    %c0_i32_1 = arith.constant 0 : i32
    return %c0_i32, %c0_i32_0 : i32, i32
  }
  func.func @transform_20(%arg0: i32) -> (i32, i32, i32) {
    %c0_i32 = arith.constant 0 : i32
    %c0_i32_0 = arith.constant 0 : i32
    %c0_i32_1 = arith.constant 0 : i32
    return %arg0, %c0_i32, %c0_i32_0 : i32, i32, i32
  }
}

</mosaic_0001>

<llo_original>
// kernel: tpu_custom_call.1
$region0: #{tpu_custom_call.1}
  #allocation0 [shape = 'u32[]', space=smem, size = 0x4, offset = 0x4, fixed_abs, tag = 'smem constant byte address 0x4 - core index']
  #allocation1 [shape = 'u32[72,128]{1,0:T(1,128)}', space=vmem, size = 0x9000, scoped, tag = 'internal scratch']
  #allocation2 [shape = 'f32[1,1]{1,0:T(1,128)S(1)}', space=vmem, size = 0x200, scoped, tag = 'scoped memory for tpu_custom_call.1']
  %s0 = inlined_call_operand.vmem [shape: f32[2,8,32], index: 0, kind: input, shape index: {}]
  %s1 = inlined_call_operand.vmem [shape: f32[8,32], index: 1, kind: input, shape index: {}]
  %s2 = inlined_call_operand.vmem [shape: bf16[2,32,96], index: 2, kind: input, shape index: {}]
  %s3 = inlined_call_operand.vmem [shape: f32[2,1,96], index: 3, kind: input, shape index: {}]
  %s4 = inlined_call_operand.vmem [shape: bf16[2,32,32], index: 4, kind: input, shape index: {}]
  %s5 = inlined_call_operand.vmem [shape: f32[2,1,32], index: 5, kind: input, shape index: {}]
  %s6 = inlined_call_operand.vmem [shape: bf16[2,32,128], index: 6, kind: input, shape index: {}]
  %s7 = inlined_call_operand.vmem [shape: f32[2,1,128], index: 7, kind: input, shape index: {}]
  %s8 = inlined_call_operand.vmem [shape: bf16[2,128,32], index: 8, kind: input, shape index: {}]
  %s9 = inlined_call_operand.vmem [shape: f32[2,1,32], index: 9, kind: input, shape index: {}]
  %s10 = inlined_call_operand.vmem [shape: f32[2,1,32], index: 10, kind: input, shape index: {}]
  %s11 = inlined_call_operand.vmem [shape: f32[2,1,32], index: 11, kind: input, shape index: {}]
  %s12 = inlined_call_operand.vmem [shape: f32[2,1,32], index: 12, kind: input, shape index: {}]
  %s13 = inlined_call_operand.vmem [shape: f32[2,1,32], index: 13, kind: input, shape index: {}]
  %s14 = inlined_call_operand.vmem [shape: f32[1,32], index: 14, kind: input, shape index: {}]
  %s15 = inlined_call_operand.vmem [shape: f32[1,32], index: 15, kind: input, shape index: {}]
  %s16 = inlined_call_operand.vmem [shape: f32[1,32], index: 16, kind: input, shape index: {}]
  %s17 = inlined_call_operand.<no memory space> [shape: f32[1,1], index: 17, kind: input, shape index: {}]
  %s18 = inlined_call_operand.vmem [shape: bf16[32,128], index: 18, kind: input, shape index: {}]
  %s19 = inlined_call_operand.vmem [shape: f32[1,128], index: 19, kind: input, shape index: {}]
  %s20 = inlined_call_operand.hbm [shape: f32[2,1,128], index: 20, kind: output, shape index: {}]
  %s21 = sld [smem:[#allocation0]]
  $region113: #{tpu_custom_call.1} parent=0
    _
  %s23 = ssub.s32 1, %s21
  %s24 = scalar_select 0, %s23, %s21
  %v25 = vstv %s17
  %26 = vst [vmem:[#allocation2] sm:$0x1] %v25
  $region1: #{tpu_custom_call.1} parent=0
    #allocation3 [shape = 'u8[1024]{0}', space=vmem, size = 0x400, scoped, tag = 'output window, operand 0']
    #allocation4 [shape = 's32[2]{0}', space=sflag, size = 0x8, scoped, tag = 'scoped memory for tpu_custom_call.1']
    %27 = vsyncpa [#allocation4], 0
    %s28 = scalar_lea.sflag [#allocation4], 1
    %29 = vsyncpa %s28, 0
    loop: start=0, step=1, limit=4
    $region2: #{tpu_custom_call.1} parent=1 // loop_pre_header
      _
    $region3: #{tpu_custom_call.1} parent=1 // loop_header
      %s31 = sphi 0, %s35
      %p32 = scmp.ge.s32.totalorder %s31, 4
      %s41 = sphi 0, %s43
      %s44 = sphi 0, %s41
      %s45 = sphi 0, %s44
      %s61 = sphi 0, %s45
      %s65 = sphi 0, %s65
      %s67 = sphi 0, %s65
      %s68 = sphi 0, %s67
      %s82 = sphi 0, %s68
      %s86 = sphi 0, %s86
      %s88 = sphi 0, %s86
      %s89 = sphi 0, %s88
      %s103 = sphi 0, %s89
      %s107 = sphi 0, %s107
      %s109 = sphi 0, %s107
      %s110 = sphi 0, %s109
      %s124 = sphi 0, %s110
      %s128 = sphi 0, %s128
      %s130 = sphi 0, %s128
      %s131 = sphi 0, %s130
      %s145 = sphi 0, %s131
      %s149 = sphi 0, %s149
      %s151 = sphi 0, %s149
      %s152 = sphi 0, %s151
      %s166 = sphi 0, %s152
      %s170 = sphi 0, %s170
      %s172 = sphi 0, %s170
      %s173 = sphi 0, %s172
      %s187 = sphi 0, %s173
      %s191 = sphi 0, %s191
      %s193 = sphi 0, %s191
      %s194 = sphi 0, %s193
      %s208 = sphi 0, %s194
      %s212 = sphi 0, %s212
      %s214 = sphi 0, %s212
      %s215 = sphi 0, %s214
      %s229 = sphi 0, %s215
      %s233 = sphi 0, %s233
      %s235 = sphi 0, %s233
      %s236 = sphi 0, %s235
      %s250 = sphi 0, %s236
      %s254 = sphi 0, %s254
      %s256 = sphi 0, %s254
      %s257 = sphi 0, %s256
      %s271 = sphi 0, %s257
      %s275 = sphi 0, %s275
      %s277 = sphi 0, %s275
      %s278 = sphi 0, %s277
      %s292 = sphi 0, %s278
      %s296 = sphi 0, %s296
      %s298 = sphi 0, %s296
      %s299 = sphi 0, %s298
      %s313 = sphi 0, %s299
      %s317 = sphi 0, %s317
      %s319 = sphi 0, %s317
      %s320 = sphi 0, %s319
      %s334 = sphi 0, %s320
      %s338 = sphi 0, %s338
      %s340 = sphi 0, %s338
      %s341 = sphi 0, %s340
      %s355 = sphi 0, %s341
      %s359 = sphi 0, %s359
      %s361 = sphi 0, %s359
      %s362 = sphi 0, %s361
      %s376 = sphi 0, %s362
      %s380 = sphi 0, %s380
      %s382 = sphi 0, %s380
      %s383 = sphi 0, %s382
      %s397 = sphi 0, %s383
      %s401 = sphi 0, %s401
      %s403 = sphi 0, %s401
      %s404 = sphi 0, %s403
      %s418 = sphi 0, %s404
      %s422 = sphi 0, %s422
      %s424 = sphi 0, %s422
      %s425 = sphi 0, %s424
      %s439 = sphi 0, %s425
      %s443 = sphi 0, %s443
      %s445 = sphi 0, %s443
      %s446 = sphi 0, %s445
      %s460 = sphi 0, %s446
      %s466 = sphi 0, %s468
      %s469 = sphi 0, %s466
      %s470 = sphi 0, %s469
      %s486 = sphi 0, %s470
    $region4: #{tpu_custom_call.1} parent=1 // loop_header_branch
      %34 = sbr.rel (%p32) target = $region8
    $region5: #{tpu_custom_call.1} parent=1 // loop_body
      %s36 = ssub.s32 %s31, 1
      %s37 = ssub.s32 %s31, 2
      %s38 = sadd.s32 %s31, 1
      %s39 = ssub.s32 %s31, %s38
      %p40 = scmp.eq.s32.totalorder %s39, 0
      %s42 = sadd.s32 %s41, 1
      %s43 = scalar_select %p40, %s41, %s42
      %p46 = pneg %p40
      %p47 = scmp.eq.s32.totalorder %s31, 1
      %p48 = por %p46, %p47
      %p49 = scmp.ne.s32.totalorder %s41, %s44
      %p50 = scmp.eq.s32.totalorder %s31, 0
      %p51 = por %p49, %p50
      %p52 = scmp.ne.s32.totalorder %s41, %s44
      %p53 = scmp.eq.s32.totalorder %s36, 1
      %p54 = por %p52, %p53
      %p55 = scmp.ne.s32.totalorder %s44, %s45
      %p56 = scmp.eq.s32.totalorder %s36, 0
      %p57 = por %p55, %p56
      %p58 = scmp.ne.s32.totalorder %s44, %s45
      %p59 = scmp.eq.s32.totalorder %s37, 1
      %p60 = por %p58, %p59
      %p62 = scmp.ne.s32.totalorder %s45, %s61
      %p63 = scmp.eq.s32.totalorder %s37, 0
      %p64 = por %p62, %p63
      %s66 = sadd.s32 %s65, 1
      %p69 = scmp.eq.s32.totalorder %s31, 1
      %p70 = scmp.ne.s32.totalorder %s65, %s67
      %p71 = scmp.eq.s32.totalorder %s31, 0
      %p72 = por %p70, %p71
      %p73 = scmp.ne.s32.totalorder %s65, %s67
      %p74 = scmp.eq.s32.totalorder %s36, 1
      %p75 = por %p73, %p74
      %p76 = scmp.ne.s32.totalorder %s67, %s68
      %p77 = scmp.eq.s32.totalorder %s36, 0
      %p78 = por %p76, %p77
      %p79 = scmp.ne.s32.totalorder %s67, %s68
      %p80 = scmp.eq.s32.totalorder %s37, 1
      %p81 = por %p79, %p80
      %p83 = scmp.ne.s32.totalorder %s68, %s82
      %p84 = scmp.eq.s32.totalorder %s37, 0
      %p85 = por %p83, %p84
      %s87 = sadd.s32 %s86, 1
      %p90 = scmp.eq.s32.totalorder %s31, 1
      %p91 = scmp.ne.s32.totalorder %s86, %s88
      %p92 = scmp.eq.s32.totalorder %s31, 0
      %p93 = por %p91, %p92
      %p94 = scmp.ne.s32.totalorder %s86, %s88
      %p95 = scmp.eq.s32.totalorder %s36, 1
      %p96 = por %p94, %p95
      %p97 = scmp.ne.s32.totalorder %s88, %s89
      %p98 = scmp.eq.s32.totalorder %s36, 0
      %p99 = por %p97, %p98
      %p100 = scmp.ne.s32.totalorder %s88, %s89
      %p101 = scmp.eq.s32.totalorder %s37, 1
      %p102 = por %p100, %p101
      %p104 = scmp.ne.s32.totalorder %s89, %s103
      %p105 = scmp.eq.s32.totalorder %s37, 0
      %p106 = por %p104, %p105
      %s108 = sadd.s32 %s107, 1
      %p111 = scmp.eq.s32.totalorder %s31, 1
      %p112 = scmp.ne.s32.totalorder %s107, %s109
      %p113 = scmp.eq.s32.totalorder %s31, 0
      %p114 = por %p112, %p113
      %p115 = scmp.ne.s32.totalorder %s107, %s109
      %p116 = scmp.eq.s32.totalorder %s36, 1
      %p117 = por %p115, %p116
      %p118 = scmp.ne.s32.totalorder %s109, %s110
      %p119 = scmp.eq.s32.totalorder %s36, 0
      %p120 = por %p118, %p119
      %p121 = scmp.ne.s32.totalorder %s109, %s110
      %p122 = scmp.eq.s32.totalorder %s37, 1
      %p123 = por %p121, %p122
      %p125 = scmp.ne.s32.totalorder %s110, %s124
      %p126 = scmp.eq.s32.totalorder %s37, 0
      %p127 = por %p125, %p126
      %s129 = sadd.s32 %s128, 1
      %p132 = scmp.eq.s32.totalorder %s31, 1
      %p133 = scmp.ne.s32.totalorder %s128, %s130
      %p134 = scmp.eq.s32.totalorder %s31, 0
      %p135 = por %p133, %p134
      %p136 = scmp.ne.s32.totalorder %s128, %s130
      %p137 = scmp.eq.s32.totalorder %s36, 1
      %p138 = por %p136, %p137
      %p139 = scmp.ne.s32.totalorder %s130, %s131
      %p140 = scmp.eq.s32.totalorder %s36, 0
      %p141 = por %p139, %p140
      %p142 = scmp.ne.s32.totalorder %s130, %s131
      %p143 = scmp.eq.s32.totalorder %s37, 1
      %p144 = por %p142, %p143
      %p146 = scmp.ne.s32.totalorder %s131, %s145
      %p147 = scmp.eq.s32.totalorder %s37, 0
      %p148 = por %p146, %p147
      %s150 = sadd.s32 %s149, 1
      %p153 = scmp.eq.s32.totalorder %s31, 1
      %p154 = scmp.ne.s32.totalorder %s149, %s151
      %p155 = scmp.eq.s32.totalorder %s31, 0
      %p156 = por %p154, %p155
      %p157 = scmp.ne.s32.totalorder %s149, %s151
      %p158 = scmp.eq.s32.totalorder %s36, 1
      %p159 = por %p157, %p158
      %p160 = scmp.ne.s32.totalorder %s151, %s152
      %p161 = scmp.eq.s32.totalorder %s36, 0
      %p162 = por %p160, %p161
      %p163 = scmp.ne.s32.totalorder %s151, %s152
      %p164 = scmp.eq.s32.totalorder %s37, 1
      %p165 = por %p163, %p164
      %p167 = scmp.ne.s32.totalorder %s152, %s166
      %p168 = scmp.eq.s32.totalorder %s37, 0
      %p169 = por %p167, %p168
      %s171 = sadd.s32 %s170, 1
      %p174 = scmp.eq.s32.totalorder %s31, 1
      %p175 = scmp.ne.s32.totalorder %s170, %s172
      %p176 = scmp.eq.s32.totalorder %s31, 0
      %p177 = por %p175, %p176
      %p178 = scmp.ne.s32.totalorder %s170, %s172
      %p179 = scmp.eq.s32.totalorder %s36, 1
      %p180 = por %p178, %p179
      %p181 = scmp.ne.s32.totalorder %s172, %s173
      %p182 = scmp.eq.s32.totalorder %s36, 0
      %p183 = por %p181, %p182
      %p184 = scmp.ne.s32.totalorder %s172, %s173
      %p185 = scmp.eq.s32.totalorder %s37, 1
      %p186 = por %p184, %p185
      %p188 = scmp.ne.s32.totalorder %s173, %s187
      %p189 = scmp.eq.s32.totalorder %s37, 0
      %p190 = por %p188, %p189
      %s192 = sadd.s32 %s191, 1
      %p195 = scmp.eq.s32.totalorder %s31, 1
      %p196 = scmp.ne.s32.totalorder %s191, %s193
      %p197 = scmp.eq.s32.totalorder %s31, 0
      %p198 = por %p196, %p197
      %p199 = scmp.ne.s32.totalorder %s191, %s193
      %p200 = scmp.eq.s32.totalorder %s36, 1
      %p201 = por %p199, %p200
      %p202 = scmp.ne.s32.totalorder %s193, %s194
      %p203 = scmp.eq.s32.totalorder %s36, 0
      %p204 = por %p202, %p203
      %p205 = scmp.ne.s32.totalorder %s193, %s194
      %p206 = scmp.eq.s32.totalorder %s37, 1
      %p207 = por %p205, %p206
      %p209 = scmp.ne.s32.totalorder %s194, %s208
      %p210 = scmp.eq.s32.totalorder %s37, 0
      %p211 = por %p209, %p210
      %s213 = sadd.s32 %s212, 1
      %p216 = scmp.eq.s32.totalorder %s31, 1
      %p217 = scmp.ne.s32.totalorder %s212, %s214
      %p218 = scmp.eq.s32.totalorder %s31, 0
      %p219 = por %p217, %p218
      %p220 = scmp.ne.s32.totalorder %s212, %s214
      %p221 = scmp.eq.s32.totalorder %s36, 1
      %p222 = por %p220, %p221
      %p223 = scmp.ne.s32.totalorder %s214, %s215
      %p224 = scmp.eq.s32.totalorder %s36, 0
      %p225 = por %p223, %p224
      %p226 = scmp.ne.s32.totalorder %s214, %s215
      %p227 = scmp.eq.s32.totalorder %s37, 1
      %p228 = por %p226, %p227
      %p230 = scmp.ne.s32.totalorder %s215, %s229
      %p231 = scmp.eq.s32.totalorder %s37, 0
      %p232 = por %p230, %p231
      %s234 = sadd.s32 %s233, 1
      %p237 = scmp.eq.s32.totalorder %s31, 1
      %p238 = scmp.ne.s32.totalorder %s233, %s235
      %p239 = scmp.eq.s32.totalorder %s31, 0
      %p240 = por %p238, %p239
      %p241 = scmp.ne.s32.totalorder %s233, %s235
      %p242 = scmp.eq.s32.totalorder %s36, 1
      %p243 = por %p241, %p242
      %p244 = scmp.ne.s32.totalorder %s235, %s236
      %p245 = scmp.eq.s32.totalorder %s36, 0
      %p246 = por %p244, %p245
      %p247 = scmp.ne.s32.totalorder %s235, %s236
      %p248 = scmp.eq.s32.totalorder %s37, 1
      %p249 = por %p247, %p248
      %p251 = scmp.ne.s32.totalorder %s236, %s250
      %p252 = scmp.eq.s32.totalorder %s37, 0
      %p253 = por %p251, %p252
      %s255 = sadd.s32 %s254, 1
      %p258 = scmp.eq.s32.totalorder %s31, 1
      %p259 = scmp.ne.s32.totalorder %s254, %s256
      %p260 = scmp.eq.s32.totalorder %s31, 0
      %p261 = por %p259, %p260
      %p262 = scmp.ne.s32.totalorder %s254, %s256
      %p263 = scmp.eq.s32.totalorder %s36, 1
      %p264 = por %p262, %p263
      %p265 = scmp.ne.s32.totalorder %s256, %s257
      %p266 = scmp.eq.s32.totalorder %s36, 0
      %p267 = por %p265, %p266
      %p268 = scmp.ne.s32.totalorder %s256, %s257
      %p269 = scmp.eq.s32.totalorder %s37, 1
      %p270 = por %p268, %p269
      %p272 = scmp.ne.s32.totalorder %s257, %s271
      %p273 = scmp.eq.s32.totalorder %s37, 0
      %p274 = por %p272, %p273
      %s276 = sadd.s32 %s275, 1
      %p279 = scmp.eq.s32.totalorder %s31, 1
      %p280 = scmp.ne.s32.totalorder %s275, %s277
      %p281 = scmp.eq.s32.totalorder %s31, 0
      %p282 = por %p280, %p281
      %p283 = scmp.ne.s32.totalorder %s275, %s277
      %p284 = scmp.eq.s32.totalorder %s36, 1
      %p285 = por %p283, %p284
      %p286 = scmp.ne.s32.totalorder %s277, %s278
      %p287 = scmp.eq.s32.totalorder %s36, 0
      %p288 = por %p286, %p287
      %p289 = scmp.ne.s32.totalorder %s277, %s278
      %p290 = scmp.eq.s32.totalorder %s37, 1
      %p291 = por %p289, %p290
      %p293 = scmp.ne.s32.totalorder %s278, %s292
      %p294 = scmp.eq.s32.totalorder %s37, 0
      %p295 = por %p293, %p294
      %s297 = sadd.s32 %s296, 1
      %p300 = scmp.eq.s32.totalorder %s31, 1
      %p301 = scmp.ne.s32.totalorder %s296, %s298
      %p302 = scmp.eq.s32.totalorder %s31, 0
      %p303 = por %p301, %p302
      %p304 = scmp.ne.s32.totalorder %s296, %s298
      %p305 = scmp.eq.s32.totalorder %s36, 1
      %p306 = por %p304, %p305
      %p307 = scmp.ne.s32.totalorder %s298, %s299
      %p308 = scmp.eq.s32.totalorder %s36, 0
      %p309 = por %p307, %p308
      %p310 = scmp.ne.s32.totalorder %s298, %s299
      %p311 = scmp.eq.s32.totalorder %s37, 1
      %p312 = por %p310, %p311
      %p314 = scmp.ne.s32.totalorder %s299, %s313
      %p315 = scmp.eq.s32.totalorder %s37, 0
      %p316 = por %p314, %p315
      %s318 = sadd.s32 %s317, 1
      %p321 = scmp.eq.s32.totalorder %s31, 1
      %p322 = scmp.ne.s32.totalorder %s317, %s319
      %p323 = scmp.eq.s32.totalorder %s31, 0
      %p324 = por %p322, %p323
      %p325 = scmp.ne.s32.totalorder %s317, %s319
      %p326 = scmp.eq.s32.totalorder %s36, 1
      %p327 = por %p325, %p326
      %p328 = scmp.ne.s32.totalorder %s319, %s320
      %p329 = scmp.eq.s32.totalorder %s36, 0
      %p330 = por %p328, %p329
      %p331 = scmp.ne.s32.totalorder %s319, %s320
      %p332 = scmp.eq.s32.totalorder %s37, 1
      %p333 = por %p331, %p332
      %p335 = scmp.ne.s32.totalorder %s320, %s334
      %p336 = scmp.eq.s32.totalorder %s37, 0
      %p337 = por %p335, %p336
      %s339 = sadd.s32 %s338, 1
      %p342 = scmp.eq.s32.totalorder %s31, 1
      %p343 = scmp.ne.s32.totalorder %s338, %s340
      %p344 = scmp.eq.s32.totalorder %s31, 0
      %p345 = por %p343, %p344
      %p346 = scmp.ne.s32.totalorder %s338, %s340
      %p347 = scmp.eq.s32.totalorder %s36, 1
      %p348 = por %p346, %p347
      %p349 = scmp.ne.s32.totalorder %s340, %s341
      %p350 = scmp.eq.s32.totalorder %s36, 0
      %p351 = por %p349, %p350
      %p352 = scmp.ne.s32.totalorder %s340, %s341
      %p353 = scmp.eq.s32.totalorder %s37, 1
      %p354 = por %p352, %p353
      %p356 = scmp.ne.s32.totalorder %s341, %s355
      %p357 = scmp.eq.s32.totalorder %s37, 0
      %p358 = por %p356, %p357
      %s360 = sadd.s32 %s359, 1
      %p363 = scmp.eq.s32.totalorder %s31, 1
      %p364 = scmp.ne.s32.totalorder %s359, %s361
      %p365 = scmp.eq.s32.totalorder %s31, 0
      %p366 = por %p364, %p365
      %p367 = scmp.ne.s32.totalorder %s359, %s361
      %p368 = scmp.eq.s32.totalorder %s36, 1
      %p369 = por %p367, %p368
      %p370 = scmp.ne.s32.totalorder %s361, %s362
      %p371 = scmp.eq.s32.totalorder %s36, 0
      %p372 = por %p370, %p371
      %p373 = scmp.ne.s32.totalorder %s361, %s362
      %p374 = scmp.eq.s32.totalorder %s37, 1
      %p375 = por %p373, %p374
      %p377 = scmp.ne.s32.totalorder %s362, %s376
      %p378 = scmp.eq.s32.totalorder %s37, 0
      %p379 = por %p377, %p378
      %s381 = sadd.s32 %s380, 1
      %p384 = scmp.eq.s32.totalorder %s31, 1
      %p385 = scmp.ne.s32.totalorder %s380, %s382
      %p386 = scmp.eq.s32.totalorder %s31, 0
      %p387 = por %p385, %p386
      %p388 = scmp.ne.s32.totalorder %s380, %s382
      %p389 = scmp.eq.s32.totalorder %s36, 1
      %p390 = por %p388, %p389
      %p391 = scmp.ne.s32.totalorder %s382, %s383
      %p392 = scmp.eq.s32.totalorder %s36, 0
      %p393 = por %p391, %p392
      %p394 = scmp.ne.s32.totalorder %s382, %s383
      %p395 = scmp.eq.s32.totalorder %s37, 1
      %p396 = por %p394, %p395
      %p398 = scmp.ne.s32.totalorder %s383, %s397
      %p399 = scmp.eq.s32.totalorder %s37, 0
      %p400 = por %p398, %p399
      %s402 = sadd.s32 %s401, 1
      %p405 = scmp.eq.s32.totalorder %s31, 1
      %p406 = scmp.ne.s32.totalorder %s401, %s403
      %p407 = scmp.eq.s32.totalorder %s31, 0
      %p408 = por %p406, %p407
      %p409 = scmp.ne.s32.totalorder %s401, %s403
      %p410 = scmp.eq.s32.totalorder %s36, 1
      %p411 = por %p409, %p410
      %p412 = scmp.ne.s32.totalorder %s403, %s404
      %p413 = scmp.eq.s32.totalorder %s36, 0
      %p414 = por %p412, %p413
      %p415 = scmp.ne.s32.totalorder %s403, %s404
      %p416 = scmp.eq.s32.totalorder %s37, 1
      %p417 = por %p415, %p416
      %p419 = scmp.ne.s32.totalorder %s404, %s418
      %p420 = scmp.eq.s32.totalorder %s37, 0
      %p421 = por %p419, %p420
      %s423 = sadd.s32 %s422, 1
      %p426 = scmp.eq.s32.totalorder %s31, 1
      %p427 = scmp.ne.s32.totalorder %s422, %s424
      %p428 = scmp.eq.s32.totalorder %s31, 0
      %p429 = por %p427, %p428
      %p430 = scmp.ne.s32.totalorder %s422, %s424
      %p431 = scmp.eq.s32.totalorder %s36, 1
      %p432 = por %p430, %p431
      %p433 = scmp.ne.s32.totalorder %s424, %s425
      %p434 = scmp.eq.s32.totalorder %s36, 0
      %p435 = por %p433, %p434
      %p436 = scmp.ne.s32.totalorder %s424, %s425
      %p437 = scmp.eq.s32.totalorder %s37, 1
      %p438 = por %p436, %p437
      %p440 = scmp.ne.s32.totalorder %s425, %s439
      %p441 = scmp.eq.s32.totalorder %s37, 0
      %p442 = por %p440, %p441
      %s444 = sadd.s32 %s443, 1
      %p447 = scmp.eq.s32.totalorder %s31, 1
      %p448 = scmp.ne.s32.totalorder %s443, %s445
      %p449 = scmp.eq.s32.totalorder %s31, 0
      %p450 = por %p448, %p449
      %p451 = scmp.ne.s32.totalorder %s443, %s445
      %p452 = scmp.eq.s32.totalorder %s36, 1
      %p453 = por %p451, %p452
      %p454 = scmp.ne.s32.totalorder %s445, %s446
      %p455 = scmp.eq.s32.totalorder %s36, 0
      %p456 = por %p454, %p455
      %p457 = scmp.ne.s32.totalorder %s445, %s446
      %p458 = scmp.eq.s32.totalorder %s37, 1
      %p459 = por %p457, %p458
      %p461 = scmp.ne.s32.totalorder %s446, %s460
      %p462 = scmp.eq.s32.totalorder %s37, 0
      %p463 = por %p461, %p462
      %s464 = ssub.s32 %s31, %s38
      %p465 = scmp.eq.s32.totalorder %s464, 0
      %s467 = sadd.s32 %s466, 1
      %s468 = scalar_select %p465, %s466, %s467
      %p471 = pneg %p465
      %p472 = scmp.eq.s32.totalorder %s31, 1
      %p473 = por %p471, %p472
      %p474 = scmp.ne.s32.totalorder %s466, %s469
      %p475 = scmp.eq.s32.totalorder %s31, 0
      %p476 = por %p474, %p475
      %p477 = scmp.ne.s32.totalorder %s466, %s469
      %p478 = scmp.eq.s32.totalorder %s36, 1
      %p479 = por %p477, %p478
      %p480 = scmp.ne.s32.totalorder %s469, %s470
      %p481 = scmp.eq.s32.totalorder %s36, 0
      %p482 = por %p480, %p481
      %p483 = scmp.ne.s32.totalorder %s469, %s470
      %p484 = scmp.eq.s32.totalorder %s37, 1
      %p485 = por %p483, %p484
      %p487 = scmp.ne.s32.totalorder %s470, %s486
      %p488 = scmp.eq.s32.totalorder %s37, 0
      %p489 = por %p487, %p488
      %p490 = scmp.le.s32.totalorder 1, %s31
      %p491 = scmp.lt.s32.totalorder %s31, 3
      %p492 = pnand %p490, %p491
      %p493 = pneg %p492
      // Predicated region
      $region9: #{tpu_custom_call.1} parent=5 // pred_check
        _
      $region10: #{tpu_custom_call.1} parent=5 // pred_check_branch
        %495 = sbr.rel (%p492) target = $region12
      $region11: #{tpu_custom_call.1} parent=5 // pred_region
        %s496 = ssub.s32 %s31, 1
        // Predicated region
        $region13: #{tpu_custom_call.1} parent=11 // pred_check
          %p497 = pneg %p78
        $region14: #{tpu_custom_call.1} parent=11 // pred_check_branch
          %499 = sbr.rel (%p497) target = $region16
        $region15: #{tpu_custom_call.1} parent=11 // pred_region
          _
        $region16: #{tpu_custom_call.1} parent=11 // pred_fallthru
          _
        // Predicated region
        $region17: #{tpu_custom_call.1} parent=11 // pred_check
          %p500 = pneg %p99
        $region18: #{tpu_custom_call.1} parent=11 // pred_check_branch
          %502 = sbr.rel (%p500) target = $region20
        $region19: #{tpu_custom_call.1} parent=11 // pred_region
          _
        $region20: #{tpu_custom_call.1} parent=11 // pred_fallthru
          _
        // Predicated region
        $region21: #{tpu_custom_call.1} parent=11 // pred_check
          %p503 = pneg %p120
        $region22: #{tpu_custom_call.1} parent=11 // pred_check_branch
          %505 = sbr.rel (%p503) target = $region24
        $region23: #{tpu_custom_call.1} parent=11 // pred_region
          _
        $region24: #{tpu_custom_call.1} parent=11 // pred_fallthru
          _
        // Predicated region
        $region25: #{tpu_custom_call.1} parent=11 // pred_check
          %p506 = pneg %p141
        $region26: #{tpu_custom_call.1} parent=11 // pred_check_branch
          %508 = sbr.rel (%p506) target = $region28
        $region27: #{tpu_custom_call.1} parent=11 // pred_region
          _
        $region28: #{tpu_custom_call.1} parent=11 // pred_fallthru
          _
        // Predicated region
        $region29: #{tpu_custom_call.1} parent=11 // pred_check
          %p509 = pneg %p162
        $region30: #{tpu_custom_call.1} parent=11 // pred_check_branch
          %511 = sbr.rel (%p509) target = $region32
        $region31: #{tpu_custom_call.1} parent=11 // pred_region
          _
        $region32: #{tpu_custom_call.1} parent=11 // pred_fallthru
          _
        // Predicated region
        $region33: #{tpu_custom_call.1} parent=11 // pred_check
          %p512 = pneg %p183
        $region34: #{tpu_custom_call.1} parent=11 // pred_check_branch
          %514 = sbr.rel (%p512) target = $region36
        $region35: #{tpu_custom_call.1} parent=11 // pred_region
          _
        $region36: #{tpu_custom_call.1} parent=11 // pred_fallthru
          _
        // Predicated region
        $region37: #{tpu_custom_call.1} parent=11 // pred_check
          %p515 = pneg %p204
        $region38: #{tpu_custom_call.1} parent=11 // pred_check_branch
          %517 = sbr.rel (%p515) target = $region40
        $region39: #{tpu_custom_call.1} parent=11 // pred_region
          _
        $region40: #{tpu_custom_call.1} parent=11 // pred_fallthru
          _
        // Predicated region
        $region41: #{tpu_custom_call.1} parent=11 // pred_check
          %p518 = pneg %p225
        $region42: #{tpu_custom_call.1} parent=11 // pred_check_branch
          %520 = sbr.rel (%p518) target = $region44
        $region43: #{tpu_custom_call.1} parent=11 // pred_region
          _
        $region44: #{tpu_custom_call.1} parent=11 // pred_fallthru
          _
        // Predicated region
        $region45: #{tpu_custom_call.1} parent=11 // pred_check
          %p521 = pneg %p246
        $region46: #{tpu_custom_call.1} parent=11 // pred_check_branch
          %523 = sbr.rel (%p521) target = $region48
        $region47: #{tpu_custom_call.1} parent=11 // pred_region
          _
        $region48: #{tpu_custom_call.1} parent=11 // pred_fallthru
          _
        // Predicated region
        $region49: #{tpu_custom_call.1} parent=11 // pred_check
          %p524 = pneg %p267
        $region50: #{tpu_custom_call.1} parent=11 // pred_check_branch
          %526 = sbr.rel (%p524) target = $region52
        $region51: #{tpu_custom_call.1} parent=11 // pred_region
          _
        $region52: #{tpu_custom_call.1} parent=11 // pred_fallthru
          _
        // Predicated region
        $region53: #{tpu_custom_call.1} parent=11 // pred_check
          %p527 = pneg %p288
        $region54: #{tpu_custom_call.1} parent=11 // pred_check_branch
          %529 = sbr.rel (%p527) target = $region56
        $region55: #{tpu_custom_call.1} parent=11 // pred_region
          _
        $region56: #{tpu_custom_call.1} parent=11 // pred_fallthru
          _
        // Predicated region
        $region57: #{tpu_custom_call.1} parent=11 // pred_check
          %p530 = pneg %p309
        $region58: #{tpu_custom_call.1} parent=11 // pred_check_branch
          %532 = sbr.rel (%p530) target = $region60
        $region59: #{tpu_custom_call.1} parent=11 // pred_region
          _
        $region60: #{tpu_custom_call.1} parent=11 // pred_fallthru
          _
        // Predicated region
        $region61: #{tpu_custom_call.1} parent=11 // pred_check
          %p533 = pneg %p330
        $region62: #{tpu_custom_call.1} parent=11 // pred_check_branch
          %535 = sbr.rel (%p533) target = $region64
        $region63: #{tpu_custom_call.1} parent=11 // pred_region
          _
        $region64: #{tpu_custom_call.1} parent=11 // pred_fallthru
          _
        // Predicated region
        $region65: #{tpu_custom_call.1} parent=11 // pred_check
          %p536 = pneg %p351
        $region66: #{tpu_custom_call.1} parent=11 // pred_check_branch
          %538 = sbr.rel (%p536) target = $region68
        $region67: #{tpu_custom_call.1} parent=11 // pred_region
          _
        $region68: #{tpu_custom_call.1} parent=11 // pred_fallthru
          _
        // Predicated region
        $region69: #{tpu_custom_call.1} parent=11 // pred_check
          %p539 = pneg %p372
        $region70: #{tpu_custom_call.1} parent=11 // pred_check_branch
          %541 = sbr.rel (%p539) target = $region72
        $region71: #{tpu_custom_call.1} parent=11 // pred_region
          _
        $region72: #{tpu_custom_call.1} parent=11 // pred_fallthru
          _
        // Predicated region
        $region73: #{tpu_custom_call.1} parent=11 // pred_check
          %p542 = pneg %p393
        $region74: #{tpu_custom_call.1} parent=11 // pred_check_branch
          %544 = sbr.rel (%p542) target = $region76
        $region75: #{tpu_custom_call.1} parent=11 // pred_region
          _
        $region76: #{tpu_custom_call.1} parent=11 // pred_fallthru
          _
        // Predicated region
        $region77: #{tpu_custom_call.1} parent=11 // pred_check
          %p545 = pneg %p414
        $region78: #{tpu_custom_call.1} parent=11 // pred_check_branch
          %547 = sbr.rel (%p545) target = $region80
        $region79: #{tpu_custom_call.1} parent=11 // pred_region
          _
        $region80: #{tpu_custom_call.1} parent=11 // pred_fallthru
          _
        // Predicated region
        $region81: #{tpu_custom_call.1} parent=11 // pred_check
          %p548 = pneg %p435
        $region82: #{tpu_custom_call.1} parent=11 // pred_check_branch
          %550 = sbr.rel (%p548) target = $region84
        $region83: #{tpu_custom_call.1} parent=11 // pred_region
          _
        $region84: #{tpu_custom_call.1} parent=11 // pred_fallthru
          _
        // Predicated region
        $region85: #{tpu_custom_call.1} parent=11 // pred_check
          %p551 = pneg %p456
        $region86: #{tpu_custom_call.1} parent=11 // pred_check_branch
          %553 = sbr.rel (%p551) target = $region88
        $region87: #{tpu_custom_call.1} parent=11 // pred_region
          _
        $region88: #{tpu_custom_call.1} parent=11 // pred_fallthru
          _
      $region12: #{tpu_custom_call.1} parent=5 // pred_fallthru
        _
      %p554 = scmp.lt.s32.totalorder %s31, 2
      // Predicated region
      $region89: #{tpu_custom_call.1} parent=5 // pred_check
        %p555 = pneg %p554
      $region90: #{tpu_custom_call.1} parent=5 // pred_check_branch
        %557 = sbr.rel (%p555) target = $region92
      $region91: #{tpu_custom_call.1} parent=5 // pred_region
        // Predicated region
        $region93: #{tpu_custom_call.1} parent=91 // pred_check
          %p558 = pneg %p51
        $region94: #{tpu_custom_call.1} parent=91 // pred_check_branch
          %560 = sbr.rel (%p558) target = $region96
        $region95: #{tpu_custom_call.1} parent=91 // pred_region
          %p561 = scmp.lt.s32.totalorder %s31, 1
          %s562 = scalar_select %p561, %s31, 1
          %s563 = smul.addr %s562, 8
          %s564 = scalar_lea.vmem %s0, %s563
        $region96: #{tpu_custom_call.1} parent=91 // pred_fallthru
          _
      $region92: #{tpu_custom_call.1} parent=5 // pred_fallthru
        _
      %p565 = scmp.le.s32.totalorder 1, %s31
      %p566 = scmp.lt.s32.totalorder %s31, 3
      %p567 = pnand %p565, %p566
      %p568 = pneg %p567
      // Predicated region
      $region97: #{tpu_custom_call.1} parent=5 // pred_check
        _
      $region98: #{tpu_custom_call.1} parent=5 // pred_check_branch
        %570 = sbr.rel (%p567) target = $region100
      $region99: #{tpu_custom_call.1} parent=5 // pred_region
        %s571 = ssub.s32 %s31, 1
        %p572 = scmp.lt.s32.totalorder %s36, 1
        %s573 = scalar_select %p572, %s36, 1
        %s574 = smul.addr %s573, 8
        %s575 = scalar_lea.vmem %s0, %s574
        %p576 = pneg %p57
        %p577 = pneg %p54
        %p578 = pneg %p78
        %p579 = pneg %p75
        %p580 = pneg %p99
        %p581 = pneg %p96
        %p582 = pneg %p120
        %p583 = pneg %p117
        %p584 = pneg %p141
        %p585 = pneg %p138
        %p586 = pneg %p162
        %p587 = pneg %p159
        %p588 = pneg %p183
        %p589 = pneg %p180
        %p590 = pneg %p204
        %p591 = pneg %p201
        %p592 = pneg %p225
        %p593 = pneg %p222
        %p594 = pneg %p246
        %p595 = pneg %p243
        %p596 = pneg %p267
        %p597 = pneg %p264
        %p598 = pneg %p288
        %p599 = pneg %p285
        %p600 = pneg %p309
        %p601 = pneg %p306
        %p602 = pneg %p330
        %p603 = pneg %p327
        %p604 = pneg %p351
        %p605 = pneg %p348
        %p606 = pneg %p372
        %p607 = pneg %p369
        %p608 = pneg %p393
        %p609 = pneg %p390
        %p610 = pneg %p414
        %p611 = pneg %p411
        %p612 = pneg %p435
        %p613 = pneg %p432
        %p614 = pneg %p456
        %p615 = pneg %p453
        %p616 = pneg %p482
        %p617 = pneg %p479
        %s618 = sand.u32 %s469, 1
        %s619 = scalar_lea.sflag [#allocation4], %s618
        %s620 = sand.u32 %s469, 1
        %s621 = scalar_lea.vmem [#allocation3], %s620
        %p622 = scmp.lt.s32.totalorder %s36, 1
        %s623 = scalar_select %p622, %s36, 1
        %s624 = smul.addr %s623, 8
        %s625 = scalar_lea.vmem %s0, %s624
        %v627 = vld [vmem:[%s625] sm:$0xff]
        %v628 = vand.u32 2147483647, %v627
        %vm629 = vcmask 261120
        %v630 = vsel %vm629, %v628, 0.0
        %631 = vadd.xlane.f32.xlu0 %v630
        %v632 = vpop.xlane.xlu0 %631
        %vm633 = vcmp.eq.f32.partialorder %v632, 0.0
        %v634 = vsel %vm633, 1, 0
        %v635 = vcvt.s32.f32 %v634
        %v636 = vsub.f32 1.0, %v635
        %v637 = vadd.f32 %v636, 1e-12
        %v638 = vld [vmem:[%s1] sm:$0xff]
        %v639 = vadd.f32 %v627, %v638
        %v640 = vmul.f32 %v639, %v637
        %v641 = vlaneseq
        %v642 = vshrl.u32 %v641, 7
        %v643 = vlaneseq
        %v644 = vand.u32 %v643, 127
        %vm645 = vcmp.le.s32.totalorder %v644, %v642
        %v646 = vsel %vm645, 0.0, -1e+30
        %v647 = vmul.f32 %v635, -1e+30
        %v648 = vld [vmem:[%s10] sm:$0x1]
        %v649 = vld [vmem:[%s11] sm:$0x1]
        %v650 = vsel %vm629, %v640, 0.0
        %651 = vadd.xlane.f32.xlu0 %v650
        %v652 = vpop.xlane.xlu0 %651
        %v653 = vrcp.pop 32.0
        %v654 = vmul.f32 32.0, %v653
        %v655 = vsub.f32 1.0, %v654
        %v656 = vmul.f32 %v653, %v655
        %v657 = vadd.f32 %v653, %v656
        %vm658 = vweird.f32 %v653
        %v659 = vsel %vm658, %v653, %v657
        %v660 = vmul.f32 %v652, %v659
        %v661 = vsub.f32 %v640, %v660
        %v662 = vmul.f32 %v661, %v661
        %v663 = vsel %vm629, %v662, 0.0
        %664 = vadd.xlane.f32.xlu0 %v663
        %v665 = vpop.xlane.xlu0 %664
        %v666 = vmul.f32 %v665, %v659
        %v667 = vadd.f32 %v666, 1e-05
        %v668 = vrsqrt.pop %v667
        %v669 = vmul.f32 %v668, %v667
        %v670 = vmul.f32 %v669, %v668
        %v671 = vmul.f32 0.5, %v670
        %v672 = vsub.f32 1.5, %v671
        %v673 = vmul.f32 %v668, %v672
        %vm674 = vweird.f32 %v667
        %vm675 = vweird.f32 %v668
        %vm676 = vmor %vm674, %vm675
        %v677 = vsel %vm676, %v668, %v673
        %v678 = vmul.f32 %v661, %v677
        %v680 = vperm.slane %v648, 0
        %v682 = vmul.f32 %v678, %v680
        %v684 = vperm.slane %v649, 0
        %v686 = vadd.f32 %v682, %v684
        %v687 = vpack.c.bf16 %v686, %v686
        %v688 = vld [vmem:[%s2] sm:$0xf]
        %v689 = vld [vmem:[%s2 + $0x4] sm:$0xf]
        %v690 = vld [vmem:[%s2 + $0x8] sm:$0xf]
        %v691 = vld [vmem:[%s2 + $0xc] sm:$0xf]
        %v692 = vld [vmem:[%s3] sm:$0x1]
        %v694 = vperm.slane %v692, 0
        %v700 = vunpack.c.l.b16 %v688
        %v701 = vunpack.c.l.b16 %v689
        %v702 = vunpack.c.l.b16 %v690
        %v703 = vunpack.c.l.b16 %v691
        %v704 = vpack.c.b16 %v701, %v700
        %v705 = vpack.c.b16 %v703, %v702
        %v709 = vsel %vm629, %v687, 0
        %711 = vmatpush.bf16.msra.mxu0 0
        %712 = vmatpush.bf16.msra.mxu0 0
        %713 = vmatpush.bf16.msra.mxu0 0
        %714 = vmatpush.bf16.msra.mxu0 0
        %715 = vmatpush.bf16.msra.mxu0 0
        %716 = vmatpush.bf16.msra.mxu0 0
        %717 = vmatpush.bf16.msra.mxu0 %v705
        %718 = vmatpush.bf16.msra.mxu0 %v704
        %719 = vmatmul.bf16.gmra.mxu0 %v709
        %v720 = vpop.f32.mrf.mxu0
        %v721 = vadd.f32 %v694, %v720
        %v722 = vpop.f32.mrf.mxu0
        %723 = vdwg.mxu0
        %725 = vrot.lane.b32.xlu0 %v721, 120
        %v726 = vpop.permute.xlu0 %725
        %728 = vrot.lane.b32.xlu0 %v721, 112
        %v729 = vpop.permute.xlu0 %728
        %731 = vrot.lane.b32.xlu0 %v721, 104
        %v732 = vpop.permute.xlu0 %731
        %v734 = vpack.c.bf16 %v721, %v721
        %v735 = vpack.c.bf16 %v726, %v726
        %v736 = vpack.c.bf16 %v729, %v729
        %v737 = vpack.c.bf16 %v732, %v732
        %v739 = vunpack.c.l.b16 %v734
        %v740 = vpack.c.b16 %v739, %v739
        %741 = vrot.lane.b32.xlu0 %v740, 96
        %v742 = vpop.permute.xlu0 %741
        %vm743 = vcmask 64512
        %v745 = vsel %vm743, %v734, 0
        %v748 = vsel %vm743, %v742, 0
        %750 = vmatpush.bf16.xpose.msra.mxu0 0
        %751 = vmatpush.bf16.xpose.msra.mxu0 0
        %752 = vmatpush.bf16.xpose.msra.mxu0 0
        %753 = vmatpush.bf16.xpose.msra.mxu0 0
        %754 = vmatpush.bf16.xpose.msra.mxu0 0
        %755 = vmatpush.bf16.xpose.msra.mxu0 0
        %756 = vmatpush.bf16.xpose.msra.mxu0 0
        %757 = vmatpush.bf16.xpose.msra.mxu0 %v748
        %758 = vmatmul.bf16.gmra.mxu0 %v745
        %v759 = vpop.f32.mrf.mxu0
        %v760 = vadd.f32 %v646, %v759
        %v761 = vpop.f32.mrf.mxu0
        %762 = vdwg.mxu0
        %v764 = vunpack.c.l.b16 %v735
        %v765 = vpack.c.b16 %v764, %v764
        %766 = vrot.lane.b32.xlu0 %v765, 96
        %v767 = vpop.permute.xlu0 %766
        %v769 = vsel %vm743, %v735, 0
        %v772 = vsel %vm743, %v767, 0
        %774 = vmatpush.bf16.xpose.msra.mxu0 0
        %775 = vmatpush.bf16.xpose.msra.mxu0 0
        %776 = vmatpush.bf16.xpose.msra.mxu0 0
        %777 = vmatpush.bf16.xpose.msra.mxu0 0
        %778 = vmatpush.bf16.xpose.msra.mxu0 0
        %779 = vmatpush.bf16.xpose.msra.mxu0 0
        %780 = vmatpush.bf16.xpose.msra.mxu0 0
        %781 = vmatpush.bf16.xpose.msra.mxu0 %v772
        %782 = vmatmul.bf16.gmra.mxu0 %v769
        %v783 = vpop.f32.mrf.mxu0
        %v784 = vadd.f32 %v646, %v783
        %v785 = vpop.f32.mrf.mxu0
        %786 = vdwg.mxu0
        %v788 = vunpack.c.l.b16 %v736
        %v789 = vpack.c.b16 %v788, %v788
        %790 = vrot.lane.b32.xlu0 %v789, 96
        %v791 = vpop.permute.xlu0 %790
        %v793 = vsel %vm743, %v736, 0
        %v796 = vsel %vm743, %v791, 0
        %798 = vmatpush.bf16.xpose.msra.mxu0 0
        %799 = vmatpush.bf16.xpose.msra.mxu0 0
        %800 = vmatpush.bf16.xpose.msra.mxu0 0
        %801 = vmatpush.bf16.xpose.msra.mxu0 0
        %802 = vmatpush.bf16.xpose.msra.mxu0 0
        %803 = vmatpush.bf16.xpose.msra.mxu0 0
        %804 = vmatpush.bf16.xpose.msra.mxu0 0
        %805 = vmatpush.bf16.xpose.msra.mxu0 %v796
        %806 = vmatmul.bf16.gmra.mxu0 %v793
        %v807 = vpop.f32.mrf.mxu0
        %v808 = vadd.f32 %v646, %v807
        %v809 = vpop.f32.mrf.mxu0
        %810 = vdwg.mxu0
        %v812 = vunpack.c.l.b16 %v737
        %v813 = vpack.c.b16 %v812, %v812
        %814 = vrot.lane.b32.xlu0 %v813, 96
        %v815 = vpop.permute.xlu0 %814
        %v817 = vsel %vm743, %v737, 0
        %v820 = vsel %vm743, %v815, 0
        %822 = vmatpush.bf16.xpose.msra.mxu0 0
        %823 = vmatpush.bf16.xpose.msra.mxu0 0
        %824 = vmatpush.bf16.xpose.msra.mxu0 0
        %825 = vmatpush.bf16.xpose.msra.mxu0 0
        %826 = vmatpush.bf16.xpose.msra.mxu0 0
        %827 = vmatpush.bf16.xpose.msra.mxu0 0
        %828 = vmatpush.bf16.xpose.msra.mxu0 0
        %829 = vmatpush.bf16.xpose.msra.mxu0 %v820
        %830 = vmatmul.bf16.gmra.mxu0 %v817
        %v831 = vpop.f32.mrf.mxu0
        %v832 = vadd.f32 %v646, %v831
        %v833 = vpop.f32.mrf.mxu0
        %834 = vdwg.mxu0
        %v836 = vperm.slane %v647, %v644
        %vm837 = vcmask 1042434
        %v838 = vsel %vm837, %v836, %v836
        %vm839 = vcmask 1043459
        %v840 = vsel %vm839, %v836, %v838
        %vm841 = vcmask 1044484
        %v842 = vsel %vm841, %v836, %v840
        %vm843 = vcmask 1045509
        %v844 = vsel %vm843, %v836, %v842
        %vm845 = vcmask 1046534
        %v846 = vsel %vm845, %v836, %v844
        %vm847 = vcmask 1047559
        %v848 = vsel %vm847, %v836, %v846
        %v850 = vadd.f32 %v760, %v848
        %v851 = vadd.f32 %v784, %v848
        %v852 = vadd.f32 %v808, %v848
        %v853 = vadd.f32 %v832, %v848
        %v854 = vsel %vm743, %v850, -inf
        %855 = vmax.xlane.f32.xlu0 %v854
        %v856 = vpop.xlane.xlu0 %855
        %v857 = vsel %vm743, %v851, -inf
        %858 = vmax.xlane.f32.xlu0 %v857
        %v859 = vpop.xlane.xlu0 %858
        %v860 = vsel %vm743, %v852, -inf
        %861 = vmax.xlane.f32.xlu0 %v860
        %v862 = vpop.xlane.xlu0 %861
        %v863 = vsel %vm743, %v853, -inf
        %864 = vmax.xlane.f32.xlu0 %v863
        %v865 = vpop.xlane.xlu0 %864
        %v866 = vsub.f32 %v850, %v856
        %v867 = vsub.f32 %v851, %v859
        %v868 = vsub.f32 %v852, %v862
        %v869 = vsub.f32 %v853, %v865
        %v870 = vmul.f32 %v866, 1.442695
        %v871 = vpow.pop %v870
        %v872 = vmul.f32 %v867, 1.442695
        %v873 = vpow.pop %v872
        %v874 = vmul.f32 %v868, 1.442695
        %v875 = vpow.pop %v874
        %v876 = vmul.f32 %v869, 1.442695
        %v877 = vpow.pop %v876
        %v878 = vsel %vm743, %v871, 0.0
        %879 = vadd.xlane.f32.xlu0 %v878
        %v880 = vpop.xlane.xlu0 %879
        %v881 = vsel %vm743, %v873, 0.0
        %882 = vadd.xlane.f32.xlu0 %v881
        %v883 = vpop.xlane.xlu0 %882
        %v884 = vsel %vm743, %v875, 0.0
        %885 = vadd.xlane.f32.xlu0 %v884
        %v886 = vpop.xlane.xlu0 %885
        %v887 = vsel %vm743, %v877, 0.0
        %888 = vadd.xlane.f32.xlu0 %v887
        %v889 = vpop.xlane.xlu0 %888
        %v890 = vrcp.pop %v880
        %v891 = vrcp.pop %v883
        %v892 = vrcp.pop %v886
        %v893 = vrcp.pop %v889
        %v894 = vmul.f32 %v871, %v890
        %v895 = vmul.f32 %v873, %v891
        %v896 = vmul.f32 %v875, %v892
        %v897 = vmul.f32 %v877, %v893
        %v898 = vpack.c.bf16 %v894, %v894
        %v899 = vpack.c.bf16 %v895, %v895
        %v900 = vpack.c.bf16 %v896, %v896
        %v901 = vpack.c.bf16 %v897, %v897
        %902 = vrot.lane.b32.xlu0 %v740, 64
        %v903 = vpop.permute.xlu0 %902
        %v905 = vsel %vm743, %v898, 0
        %vm907 = vcmask 1043456
        %v909 = vsel %vm907, %v903, 0
        %911 = vmatpush.bf16.msra.mxu0 0
        %912 = vmatpush.bf16.msra.mxu0 0
        %913 = vmatpush.bf16.msra.mxu0 0
        %914 = vmatpush.bf16.msra.mxu0 0
        %915 = vmatpush.bf16.msra.mxu0 0
        %916 = vmatpush.bf16.msra.mxu0 0
        %917 = vmatpush.bf16.msra.mxu0 0
        %918 = vmatpush.bf16.msra.mxu0 %v909
        %919 = vmatmul.bf16.gmra.mxu0 %v905
        %v920 = vpop.f32.mrf.mxu0
        %v921 = vadd.f32 0.0, %v920
        %v922 = vpop.f32.mrf.mxu0
        %923 = vdwg.mxu0
        %924 = vrot.lane.b32.xlu0 %v765, 64
        %v925 = vpop.permute.xlu0 %924
        %v927 = vsel %vm743, %v899, 0
        %v930 = vsel %vm907, %v925, 0
        %932 = vmatpush.bf16.msra.mxu0 0
        %933 = vmatpush.bf16.msra.mxu0 0
        %934 = vmatpush.bf16.msra.mxu0 0
        %935 = vmatpush.bf16.msra.mxu0 0
        %936 = vmatpush.bf16.msra.mxu0 0
        %937 = vmatpush.bf16.msra.mxu0 0
        %938 = vmatpush.bf16.msra.mxu0 0
        %939 = vmatpush.bf16.msra.mxu0 %v930
        %940 = vmatmul.bf16.gmra.mxu0 %v927
        %v941 = vpop.f32.mrf.mxu0
        %v942 = vadd.f32 0.0, %v941
        %v943 = vpop.f32.mrf.mxu0
        %944 = vdwg.mxu0
        %945 = vrot.lane.b32.xlu0 %v789, 64
        %v946 = vpop.permute.xlu0 %945
        %v948 = vsel %vm743, %v900, 0
        %v951 = vsel %vm907, %v946, 0
        %953 = vmatpush.bf16.msra.mxu0 0
        %954 = vmatpush.bf16.msra.mxu0 0
        %955 = vmatpush.bf16.msra.mxu0 0
        %956 = vmatpush.bf16.msra.mxu0 0
        %957 = vmatpush.bf16.msra.mxu0 0
        %958 = vmatpush.bf16.msra.mxu0 0
        %959 = vmatpush.bf16.msra.mxu0 0
        %960 = vmatpush.bf16.msra.mxu0 %v951
        %961 = vmatmul.bf16.gmra.mxu0 %v948
        %v962 = vpop.f32.mrf.mxu0
        %v963 = vadd.f32 0.0, %v962
        %v964 = vpop.f32.mrf.mxu0
        %965 = vdwg.mxu0
        %966 = vrot.lane.b32.xlu0 %v813, 64
        %v967 = vpop.permute.xlu0 %966
        %v969 = vsel %vm743, %v901, 0
        %v972 = vsel %vm907, %v967, 0
        %974 = vmatpush.bf16.msra.mxu0 0
        %975 = vmatpush.bf16.msra.mxu0 0
        %976 = vmatpush.bf16.msra.mxu0 0
        %977 = vmatpush.bf16.msra.mxu0 0
        %978 = vmatpush.bf16.msra.mxu0 0
        %979 = vmatpush.bf16.msra.mxu0 0
        %980 = vmatpush.bf16.msra.mxu0 0
        %981 = vmatpush.bf16.msra.mxu0 %v972
        %982 = vmatmul.bf16.gmra.mxu0 %v969
        %v983 = vpop.f32.mrf.mxu0
        %v984 = vadd.f32 0.0, %v983
        %v985 = vpop.f32.mrf.mxu0
        %986 = vdwg.mxu0
        %988 = vrot.lane.b32.xlu0 %v942, 8
        %v989 = vpop.permute.xlu0 %988
        %992 = vrot.lane.b32.xlu0 %v963, 16
        %v993 = vpop.permute.xlu0 %992
        %996 = vrot.lane.b32.xlu0 %v984, 24
        %v997 = vpop.permute.xlu0 %996
        %v999 = vsel %vm743, %v921, %v989
        %vm1000 = vcmask 130048
        %v1001 = vsel %vm1000, %v999, %v993
        %vm1002 = vcmask 195584
        %v1003 = vsel %vm1002, %v1001, %v997
        %v1004 = vpack.c.bf16 %v1003, %v1003
        %v1005 = vld [vmem:[%s4] sm:$0xf]
        %v1006 = vld [vmem:[%s4 + $0x4] sm:$0xf]
        %v1007 = vld [vmem:[%s4 + $0x8] sm:$0xf]
        %v1008 = vld [vmem:[%s4 + $0xc] sm:$0xf]
        %v1009 = vld [vmem:[%s5] sm:$0x1]
        %v1011 = vperm.slane %v1009, 0
        %v1017 = vunpack.c.l.b16 %v1005
        %v1018 = vunpack.c.l.b16 %v1006
        %v1019 = vunpack.c.l.b16 %v1007
        %v1020 = vunpack.c.l.b16 %v1008
        %v1021 = vpack.c.b16 %v1018, %v1017
        %v1022 = vpack.c.b16 %v1020, %v1019
        %v1026 = vsel %vm629, %v1004, 0
        %1028 = vmatpush.bf16.msra.mxu0 0
        %1029 = vmatpush.bf16.msra.mxu0 0
        %1030 = vmatpush.bf16.msra.mxu0 0
        %1031 = vmatpush.bf16.msra.mxu0 0
        %1032 = vmatpush.bf16.msra.mxu0 0
        %1033 = vmatpush.bf16.msra.mxu0 0
        %1034 = vmatpush.bf16.msra.mxu0 %v1022
        %1035 = vmatpush.bf16.msra.mxu0 %v1021
        %1036 = vmatmul.bf16.gmra.mxu0 %v1026
        %v1037 = vpop.f32.mrf.mxu0
        %v1038 = vadd.f32 %v1011, %v1037
        %v1039 = vpop.f32.mrf.mxu0
        %1040 = vdwg.mxu0
        %v1041 = vadd.f32 %v640, %v1038
        %v1042 = vld [vmem:[%s12] sm:$0x1]
        %v1043 = vld [vmem:[%s13] sm:$0x1]
        %v1044 = vsel %vm629, %v1041, 0.0
        %1045 = vadd.xlane.f32.xlu0 %v1044
        %v1046 = vpop.xlane.xlu0 %1045
        %v1047 = vmul.f32 %v1046, %v659
        %v1048 = vsub.f32 %v1041, %v1047
        %v1049 = vmul.f32 %v1048, %v1048
        %v1050 = vsel %vm629, %v1049, 0.0
        %1051 = vadd.xlane.f32.xlu0 %v1050
        %v1052 = vpop.xlane.xlu0 %1051
        %v1053 = vmul.f32 %v1052, %v659
        %v1054 = vadd.f32 %v1053, 1e-05
        %v1055 = vrsqrt.pop %v1054
        %v1056 = vmul.f32 %v1055, %v1054
        %v1057 = vmul.f32 %v1056, %v1055
        %v1058 = vmul.f32 0.5, %v1057
        %v1059 = vsub.f32 1.5, %v1058
        %v1060 = vmul.f32 %v1055, %v1059
        %vm1061 = vweird.f32 %v1054
        %vm1062 = vweird.f32 %v1055
        %vm1063 = vmor %vm1061, %vm1062
        %v1064 = vsel %vm1063, %v1055, %v1060
        %v1065 = vmul.f32 %v1048, %v1064
        %v1067 = vperm.slane %v1042, 0
        %v1069 = vmul.f32 %v1065, %v1067
        %v1071 = vperm.slane %v1043, 0
        %v1073 = vadd.f32 %v1069, %v1071
        %v1074 = vpack.c.bf16 %v1073, %v1073
        %v1075 = vld [vmem:[%s6] sm:$0xf]
        %v1076 = vld [vmem:[%s6 + $0x4] sm:$0xf]
        %v1077 = vld [vmem:[%s6 + $0x8] sm:$0xf]
        %v1078 = vld [vmem:[%s6 + $0xc] sm:$0xf]
        %v1079 = vld [vmem:[%s7] sm:$0x1]
        %v1081 = vperm.slane %v1079, 0
        %v1087 = vunpack.c.l.b16 %v1075
        %v1088 = vunpack.c.l.b16 %v1076
        %v1089 = vunpack.c.l.b16 %v1077
        %v1090 = vunpack.c.l.b16 %v1078
        %v1091 = vpack.c.b16 %v1088, %v1087
        %v1092 = vpack.c.b16 %v1090, %v1089
        %v1096 = vsel %vm629, %v1074, 0
        %1098 = vmatpush.bf16.msra.mxu0 0
        %1099 = vmatpush.bf16.msra.mxu0 0
        %1100 = vmatpush.bf16.msra.mxu0 0
        %1101 = vmatpush.bf16.msra.mxu0 0
        %1102 = vmatpush.bf16.msra.mxu0 0
        %1103 = vmatpush.bf16.msra.mxu0 0
        %1104 = vmatpush.bf16.msra.mxu0 %v1092
        %1105 = vmatpush.bf16.msra.mxu0 %v1091
        %1106 = vmatmul.bf16.gmra.mxu0 %v1096
        %v1107 = vpop.f32.mrf.mxu0
        %v1108 = vadd.f32 %v1081, %v1107
        %v1109 = vpop.f32.mrf.mxu0
        %1110 = vdwg.mxu0
        %v1111 = vmax.f32 %v1108, 0.0
        %v1112 = vpack.c.bf16 %v1111, %v1111
        %v1113 = vld [vmem:[%s8] sm:$0xf]
        %v1114 = vld [vmem:[%s8 + $0x4] sm:$0xf]
        %v1115 = vld [vmem:[%s8 + $0x8] sm:$0xf]
        %v1116 = vld [vmem:[%s8 + $0xc] sm:$0xf]
        %v1117 = vld [vmem:[%s8 + $0x10] sm:$0xf]
        %v1118 = vld [vmem:[%s8 + $0x14] sm:$0xf]
        %v1119 = vld [vmem:[%s8 + $0x18] sm:$0xf]
        %v1120 = vld [vmem:[%s8 + $0x1c] sm:$0xf]
        %v1121 = vld [vmem:[%s8 + $0x20] sm:$0xf]
        %v1122 = vld [vmem:[%s8 + $0x24] sm:$0xf]
        %v1123 = vld [vmem:[%s8 + $0x28] sm:$0xf]
        %v1124 = vld [vmem:[%s8 + $0x2c] sm:$0xf]
        %v1125 = vld [vmem:[%s8 + $0x30] sm:$0xf]
        %v1126 = vld [vmem:[%s8 + $0x34] sm:$0xf]
        %v1127 = vld [vmem:[%s8 + $0x38] sm:$0xf]
        %v1128 = vld [vmem:[%s8 + $0x3c] sm:$0xf]
        %v1129 = vld [vmem:[%s9] sm:$0x1]
        %v1131 = vperm.slane %v1129, 0
        %v1149 = vunpack.c.l.b16 %v1113
        %v1150 = vunpack.c.l.b16 %v1114
        %v1151 = vunpack.c.l.b16 %v1115
        %v1152 = vunpack.c.l.b16 %v1116
        %v1153 = vunpack.c.l.b16 %v1117
        %v1154 = vunpack.c.l.b16 %v1118
        %v1155 = vunpack.c.l.b16 %v1119
        %v1156 = vunpack.c.l.b16 %v1120
        %v1157 = vunpack.c.l.b16 %v1121
        %v1158 = vunpack.c.l.b16 %v1122
        %v1159 = vunpack.c.l.b16 %v1123
        %v1160 = vunpack.c.l.b16 %v1124
        %v1161 = vunpack.c.l.b16 %v1125
        %v1162 = vunpack.c.l.b16 %v1126
        %v1163 = vunpack.c.l.b16 %v1127
        %v1164 = vunpack.c.l.b16 %v1128
        %v1165 = vpack.c.b16 %v1150, %v1149
        %v1166 = vpack.c.b16 %v1152, %v1151
        %v1167 = vpack.c.b16 %v1154, %v1153
        %v1168 = vpack.c.b16 %v1156, %v1155
        %v1169 = vpack.c.b16 %v1158, %v1157
        %v1170 = vpack.c.b16 %v1160, %v1159
        %v1171 = vpack.c.b16 %v1162, %v1161
        %v1172 = vpack.c.b16 %v1164, %v1163
        %1181 = vmatpush.bf16.msra.mxu0 %v1172
        %1182 = vmatpush.bf16.msra.mxu0 %v1171
        %1183 = vmatpush.bf16.msra.mxu0 %v1170
        %1184 = vmatpush.bf16.msra.mxu0 %v1169
        %1185 = vmatpush.bf16.msra.mxu0 %v1168
        %1186 = vmatpush.bf16.msra.mxu0 %v1167
        %1187 = vmatpush.bf16.msra.mxu0 %v1166
        %1188 = vmatpush.bf16.msra.mxu0 %v1165
        %1189 = vmatmul.bf16.gmra.mxu0 %v1112
        %v1190 = vpop.f32.mrf.mxu0
        %v1191 = vadd.f32 %v1131, %v1190
        %v1192 = vpop.f32.mrf.mxu0
        %1193 = vdwg.mxu0
        %v1194 = vadd.f32 %v1041, %v1191
        %s1195 = scalar_lea.vmem %s10, 1
        %v1196 = vld [vmem:[%s1195] sm:$0x1]
        %s1197 = scalar_lea.vmem %s11, 1
        %v1198 = vld [vmem:[%s1197] sm:$0x1]
        %v1199 = vsel %vm629, %v1194, 0.0
        %1200 = vadd.xlane.f32.xlu0 %v1199
        %v1201 = vpop.xlane.xlu0 %1200
        %v1202 = vmul.f32 %v1201, %v659
        %v1203 = vsub.f32 %v1194, %v1202
        %v1204 = vmul.f32 %v1203, %v1203
        %v1205 = vsel %vm629, %v1204, 0.0
        %1206 = vadd.xlane.f32.xlu0 %v1205
        %v1207 = vpop.xlane.xlu0 %1206
        %v1208 = vmul.f32 %v1207, %v659
        %v1209 = vadd.f32 %v1208, 1e-05
        %v1210 = vrsqrt.pop %v1209
        %v1211 = vmul.f32 %v1210, %v1209
        %v1212 = vmul.f32 %v1211, %v1210
        %v1213 = vmul.f32 0.5, %v1212
        %v1214 = vsub.f32 1.5, %v1213
        %v1215 = vmul.f32 %v1210, %v1214
        %vm1216 = vweird.f32 %v1209
        %vm1217 = vweird.f32 %v1210
        %vm1218 = vmor %vm1216, %vm1217
        %v1219 = vsel %vm1218, %v1210, %v1215
        %v1220 = vmul.f32 %v1203, %v1219
        %v1222 = vperm.slane %v1196, 0
        %v1224 = vmul.f32 %v1220, %v1222
        %v1226 = vperm.slane %v1198, 0
        %v1228 = vadd.f32 %v1224, %v1226
        %v1229 = vpack.c.bf16 %v1228, %v1228
        %s1230 = scalar_lea.vmem %s2, 16
        %v1231 = vld [vmem:[%s1230] sm:$0xf]
        %v1232 = vld [vmem:[%s1230 + $0x4] sm:$0xf]
        %v1233 = vld [vmem:[%s1230 + $0x8] sm:$0xf]
        %v1234 = vld [vmem:[%s1230 + $0xc] sm:$0xf]
        %s1235 = scalar_lea.vmem %s3, 1
        %v1236 = vld [vmem:[%s1235] sm:$0x1]
        %v1238 = vperm.slane %v1236, 0
        %v1244 = vunpack.c.l.b16 %v1231
        %v1245 = vunpack.c.l.b16 %v1232
        %v1246 = vunpack.c.l.b16 %v1233
        %v1247 = vunpack.c.l.b16 %v1234
        %v1248 = vpack.c.b16 %v1245, %v1244
        %v1249 = vpack.c.b16 %v1247, %v1246
        %v1253 = vsel %vm629, %v1229, 0
        %1255 = vmatpush.bf16.msra.mxu0 0
        %1256 = vmatpush.bf16.msra.mxu0 0
        %1257 = vmatpush.bf16.msra.mxu0 0
        %1258 = vmatpush.bf16.msra.mxu0 0
        %1259 = vmatpush.bf16.msra.mxu0 0
        %1260 = vmatpush.bf16.msra.mxu0 0
        %1261 = vmatpush.bf16.msra.mxu0 %v1249
        %1262 = vmatpush.bf16.msra.mxu0 %v1248
        %1263 = vmatmul.bf16.gmra.mxu0 %v1253
        %v1264 = vpop.f32.mrf.mxu0
        %v1265 = vadd.f32 %v1238, %v1264
        %v1266 = vpop.f32.mrf.mxu0
        %1267 = vdwg.mxu0
        %1269 = vrot.lane.b32.xlu0 %v1265, 120
        %v1270 = vpop.permute.xlu0 %1269
        %1272 = vrot.lane.b32.xlu0 %v1265, 112
        %v1273 = vpop.permute.xlu0 %1272
        %1275 = vrot.lane.b32.xlu0 %v1265, 104
        %v1276 = vpop.permute.xlu0 %1275
        %v1278 = vpack.c.bf16 %v1265, %v1265
        %v1279 = vpack.c.bf16 %v1270, %v1270
        %v1280 = vpack.c.bf16 %v1273, %v1273
        %v1281 = vpack.c.bf16 %v1276, %v1276
        %v1283 = vunpack.c.l.b16 %v1278
        %v1284 = vpack.c.b16 %v1283, %v1283
        %1285 = vrot.lane.b32.xlu0 %v1284, 96
        %v1286 = vpop.permute.xlu0 %1285
        %v1288 = vsel %vm743, %v1278, 0
        %v1291 = vsel %vm743, %v1286, 0
        %1293 = vmatpush.bf16.xpose.msra.mxu0 0
        %1294 = vmatpush.bf16.xpose.msra.mxu0 0
        %1295 = vmatpush.bf16.xpose.msra.mxu0 0
        %1296 = vmatpush.bf16.xpose.msra.mxu0 0
        %1297 = vmatpush.bf16.xpose.msra.mxu0 0
        %1298 = vmatpush.bf16.xpose.msra.mxu0 0
        %1299 = vmatpush.bf16.xpose.msra.mxu0 0
        %1300 = vmatpush.bf16.xpose.msra.mxu0 %v1291
        %1301 = vmatmul.bf16.gmra.mxu0 %v1288
        %v1302 = vpop.f32.mrf.mxu0
        %v1303 = vadd.f32 %v646, %v1302
        %v1304 = vpop.f32.mrf.mxu0
        %1305 = vdwg.mxu0
        %v1307 = vunpack.c.l.b16 %v1279
        %v1308 = vpack.c.b16 %v1307, %v1307
        %1309 = vrot.lane.b32.xlu0 %v1308, 96
        %v1310 = vpop.permute.xlu0 %1309
        %v1312 = vsel %vm743, %v1279, 0
        %v1315 = vsel %vm743, %v1310, 0
        %1317 = vmatpush.bf16.xpose.msra.mxu0 0
        %1318 = vmatpush.bf16.xpose.msra.mxu0 0
        %1319 = vmatpush.bf16.xpose.msra.mxu0 0
        %1320 = vmatpush.bf16.xpose.msra.mxu0 0
        %1321 = vmatpush.bf16.xpose.msra.mxu0 0
        %1322 = vmatpush.bf16.xpose.msra.mxu0 0
        %1323 = vmatpush.bf16.xpose.msra.mxu0 0
        %1324 = vmatpush.bf16.xpose.msra.mxu0 %v1315
        %1325 = vmatmul.bf16.gmra.mxu0 %v1312
        %v1326 = vpop.f32.mrf.mxu0
        %v1327 = vadd.f32 %v646, %v1326
        %v1328 = vpop.f32.mrf.mxu0
        %1329 = vdwg.mxu0
        %v1331 = vunpack.c.l.b16 %v1280
        %v1332 = vpack.c.b16 %v1331, %v1331
        %1333 = vrot.lane.b32.xlu0 %v1332, 96
        %v1334 = vpop.permute.xlu0 %1333
        %v1336 = vsel %vm743, %v1280, 0
        %v1339 = vsel %vm743, %v1334, 0
        %1341 = vmatpush.bf16.xpose.msra.mxu0 0
        %1342 = vmatpush.bf16.xpose.msra.mxu0 0
        %1343 = vmatpush.bf16.xpose.msra.mxu0 0
        %1344 = vmatpush.bf16.xpose.msra.mxu0 0
        %1345 = vmatpush.bf16.xpose.msra.mxu0 0
        %1346 = vmatpush.bf16.xpose.msra.mxu0 0
        %1347 = vmatpush.bf16.xpose.msra.mxu0 0
        %1348 = vmatpush.bf16.xpose.msra.mxu0 %v1339
        %1349 = vmatmul.bf16.gmra.mxu0 %v1336
        %v1350 = vpop.f32.mrf.mxu0
        %v1351 = vadd.f32 %v646, %v1350
        %v1352 = vpop.f32.mrf.mxu0
        %1353 = vdwg.mxu0
        %v1355 = vunpack.c.l.b16 %v1281
        %v1356 = vpack.c.b16 %v1355, %v1355
        %1357 = vrot.lane.b32.xlu0 %v1356, 96
        %v1358 = vpop.permute.xlu0 %1357
        %v1360 = vsel %vm743, %v1281, 0
        %v1363 = vsel %vm743, %v1358, 0
        %1365 = vmatpush.bf16.xpose.msra.mxu0 0
        %1366 = vmatpush.bf16.xpose.msra.mxu0 0
        %1367 = vmatpush.bf16.xpose.msra.mxu0 0
        %1368 = vmatpush.bf16.xpose.msra.mxu0 0
        %1369 = vmatpush.bf16.xpose.msra.mxu0 0
        %1370 = vmatpush.bf16.xpose.msra.mxu0 0
        %1371 = vmatpush.bf16.xpose.msra.mxu0 0
        %1372 = vmatpush.bf16.xpose.msra.mxu0 %v1363
        %1373 = vmatmul.bf16.gmra.mxu0 %v1360
        %v1374 = vpop.f32.mrf.mxu0
        %v1375 = vadd.f32 %v646, %v1374
        %v1376 = vpop.f32.mrf.mxu0
        %1377 = vdwg.mxu0
        %v1378 = vadd.f32 %v1303, %v848
        %v1379 = vadd.f32 %v1327, %v848
        %v1380 = vadd.f32 %v1351, %v848
        %v1381 = vadd.f32 %v1375, %v848
        %v1382 = vsel %vm743, %v1378, -inf
        %1383 = vmax.xlane.f32.xlu0 %v1382
        %v1384 = vpop.xlane.xlu0 %1383
        %v1385 = vsel %vm743, %v1379, -inf
        %1386 = vmax.xlane.f32.xlu0 %v1385
        %v1387 = vpop.xlane.xlu0 %1386
        %v1388 = vsel %vm743, %v1380, -inf
        %1389 = vmax.xlane.f32.xlu0 %v1388
        %v1390 = vpop.xlane.xlu0 %1389
        %v1391 = vsel %vm743, %v1381, -inf
        %1392 = vmax.xlane.f32.xlu0 %v1391
        %v1393 = vpop.xlane.xlu0 %1392
        %v1394 = vsub.f32 %v1378, %v1384
        %v1395 = vsub.f32 %v1379, %v1387
        %v1396 = vsub.f32 %v1380, %v1390
        %v1397 = vsub.f32 %v1381, %v1393
        %v1398 = vmul.f32 %v1394, 1.442695
        %v1399 = vpow.pop %v1398
        %v1400 = vmul.f32 %v1395, 1.442695
        %v1401 = vpow.pop %v1400
        %v1402 = vmul.f32 %v1396, 1.442695
        %v1403 = vpow.pop %v1402
        %v1404 = vmul.f32 %v1397, 1.442695
        %v1405 = vpow.pop %v1404
        %v1406 = vsel %vm743, %v1399, 0.0
        %1407 = vadd.xlane.f32.xlu0 %v1406
        %v1408 = vpop.xlane.xlu0 %1407
        %v1409 = vsel %vm743, %v1401, 0.0
        %1410 = vadd.xlane.f32.xlu0 %v1409
        %v1411 = vpop.xlane.xlu0 %1410
        %v1412 = vsel %vm743, %v1403, 0.0
        %1413 = vadd.xlane.f32.xlu0 %v1412
        %v1414 = vpop.xlane.xlu0 %1413
        %v1415 = vsel %vm743, %v1405, 0.0
        %1416 = vadd.xlane.f32.xlu0 %v1415
        %v1417 = vpop.xlane.xlu0 %1416
        %v1418 = vrcp.pop %v1408
        %v1419 = vrcp.pop %v1411
        %v1420 = vrcp.pop %v1414
        %v1421 = vrcp.pop %v1417
        %v1422 = vmul.f32 %v1399, %v1418
        %v1423 = vmul.f32 %v1401, %v1419
        %v1424 = vmul.f32 %v1403, %v1420
        %v1425 = vmul.f32 %v1405, %v1421
        %v1426 = vpack.c.bf16 %v1422, %v1422
        %v1427 = vpack.c.bf16 %v1423, %v1423
        %v1428 = vpack.c.bf16 %v1424, %v1424
        %v1429 = vpack.c.bf16 %v1425, %v1425
        %1430 = vrot.lane.b32.xlu0 %v1284, 64
        %v1431 = vpop.permute.xlu0 %1430
        %v1433 = vsel %vm743, %v1426, 0
        %v1436 = vsel %vm907, %v1431, 0
        %1438 = vmatpush.bf16.msra.mxu0 0
        %1439 = vmatpush.bf16.msra.mxu0 0
        %1440 = vmatpush.bf16.msra.mxu0 0
        %1441 = vmatpush.bf16.msra.mxu0 0
        %1442 = vmatpush.bf16.msra.mxu0 0
        %1443 = vmatpush.bf16.msra.mxu0 0
        %1444 = vmatpush.bf16.msra.mxu0 0
        %1445 = vmatpush.bf16.msra.mxu0 %v1436
        %1446 = vmatmul.bf16.gmra.mxu0 %v1433
        %v1447 = vpop.f32.mrf.mxu0
        %v1448 = vadd.f32 0.0, %v1447
        %v1449 = vpop.f32.mrf.mxu0
        %1450 = vdwg.mxu0
        %1451 = vrot.lane.b32.xlu0 %v1308, 64
        %v1452 = vpop.permute.xlu0 %1451
        %v1454 = vsel %vm743, %v1427, 0
        %v1457 = vsel %vm907, %v1452, 0
        %1459 = vmatpush.bf16.msra.mxu0 0
        %1460 = vmatpush.bf16.msra.mxu0 0
        %1461 = vmatpush.bf16.msra.mxu0 0
        %1462 = vmatpush.bf16.msra.mxu0 0
        %1463 = vmatpush.bf16.msra.mxu0 0
        %1464 = vmatpush.bf16.msra.mxu0 0
        %1465 = vmatpush.bf16.msra.mxu0 0
        %1466 = vmatpush.bf16.msra.mxu0 %v1457
        %1467 = vmatmul.bf16.gmra.mxu0 %v1454
        %v1468 = vpop.f32.mrf.mxu0
        %v1469 = vadd.f32 0.0, %v1468
        %v1470 = vpop.f32.mrf.mxu0
        %1471 = vdwg.mxu0
        %1472 = vrot.lane.b32.xlu0 %v1332, 64
        %v1473 = vpop.permute.xlu0 %1472
        %v1475 = vsel %vm743, %v1428, 0
        %v1478 = vsel %vm907, %v1473, 0
        %1480 = vmatpush.bf16.msra.mxu0 0
        %1481 = vmatpush.bf16.msra.mxu0 0
        %1482 = vmatpush.bf16.msra.mxu0 0
        %1483 = vmatpush.bf16.msra.mxu0 0
        %1484 = vmatpush.bf16.msra.mxu0 0
        %1485 = vmatpush.bf16.msra.mxu0 0
        %1486 = vmatpush.bf16.msra.mxu0 0
        %1487 = vmatpush.bf16.msra.mxu0 %v1478
        %1488 = vmatmul.bf16.gmra.mxu0 %v1475
        %v1489 = vpop.f32.mrf.mxu0
        %v1490 = vadd.f32 0.0, %v1489
        %v1491 = vpop.f32.mrf.mxu0
        %1492 = vdwg.mxu0
        %1493 = vrot.lane.b32.xlu0 %v1356, 64
        %v1494 = vpop.permute.xlu0 %1493
        %v1496 = vsel %vm743, %v1429, 0
        %v1499 = vsel %vm907, %v1494, 0
        %1501 = vmatpush.bf16.msra.mxu0 0
        %1502 = vmatpush.bf16.msra.mxu0 0
        %1503 = vmatpush.bf16.msra.mxu0 0
        %1504 = vmatpush.bf16.msra.mxu0 0
        %1505 = vmatpush.bf16.msra.mxu0 0
        %1506 = vmatpush.bf16.msra.mxu0 0
        %1507 = vmatpush.bf16.msra.mxu0 0
        %1508 = vmatpush.bf16.msra.mxu0 %v1499
        %1509 = vmatmul.bf16.gmra.mxu0 %v1496
        %v1510 = vpop.f32.mrf.mxu0
        %v1511 = vadd.f32 0.0, %v1510
        %v1512 = vpop.f32.mrf.mxu0
        %1513 = vdwg.mxu0
        %1515 = vrot.lane.b32.xlu0 %v1469, 8
        %v1516 = vpop.permute.xlu0 %1515
        %1519 = vrot.lane.b32.xlu0 %v1490, 16
        %v1520 = vpop.permute.xlu0 %1519
        %1523 = vrot.lane.b32.xlu0 %v1511, 24
        %v1524 = vpop.permute.xlu0 %1523
        %v1526 = vsel %vm743, %v1448, %v1516
        %v1527 = vsel %vm1000, %v1526, %v1520
        %v1528 = vsel %vm1002, %v1527, %v1524
        %v1529 = vpack.c.bf16 %v1528, %v1528
        %s1530 = scalar_lea.vmem %s4, 16
        %v1531 = vld [vmem:[%s1530] sm:$0xf]
        %v1532 = vld [vmem:[%s1530 + $0x4] sm:$0xf]
        %v1533 = vld [vmem:[%s1530 + $0x8] sm:$0xf]
        %v1534 = vld [vmem:[%s1530 + $0xc] sm:$0xf]
        %s1535 = scalar_lea.vmem %s5, 1
        %v1536 = vld [vmem:[%s1535] sm:$0x1]
        %v1538 = vperm.slane %v1536, 0
        %v1544 = vunpack.c.l.b16 %v1531
        %v1545 = vunpack.c.l.b16 %v1532
        %v1546 = vunpack.c.l.b16 %v1533
        %v1547 = vunpack.c.l.b16 %v1534
        %v1548 = vpack.c.b16 %v1545, %v1544
        %v1549 = vpack.c.b16 %v1547, %v1546
        %v1553 = vsel %vm629, %v1529, 0
        %1555 = vmatpush.bf16.msra.mxu0 0
        %1556 = vmatpush.bf16.msra.mxu0 0
        %1557 = vmatpush.bf16.msra.mxu0 0
        %1558 = vmatpush.bf16.msra.mxu0 0
        %1559 = vmatpush.bf16.msra.mxu0 0
        %1560 = vmatpush.bf16.msra.mxu0 0
        %1561 = vmatpush.bf16.msra.mxu0 %v1549
        %1562 = vmatpush.bf16.msra.mxu0 %v1548
        %1563 = vmatmul.bf16.gmra.mxu0 %v1553
        %v1564 = vpop.f32.mrf.mxu0
        %v1565 = vadd.f32 %v1538, %v1564
        %v1566 = vpop.f32.mrf.mxu0
        %1567 = vdwg.mxu0
        %v1568 = vadd.f32 %v1194, %v1565
        %s1569 = scalar_lea.vmem %s12, 1
        %v1570 = vld [vmem:[%s1569] sm:$0x1]
        %s1571 = scalar_lea.vmem %s13, 1
        %v1572 = vld [vmem:[%s1571] sm:$0x1]
        %v1573 = vsel %vm629, %v1568, 0.0
        %1574 = vadd.xlane.f32.xlu0 %v1573
        %v1575 = vpop.xlane.xlu0 %1574
        %v1576 = vmul.f32 %v1575, %v659
        %v1577 = vsub.f32 %v1568, %v1576
        %v1578 = vmul.f32 %v1577, %v1577
        %v1579 = vsel %vm629, %v1578, 0.0
        %1580 = vadd.xlane.f32.xlu0 %v1579
        %v1581 = vpop.xlane.xlu0 %1580
        %v1582 = vmul.f32 %v1581, %v659
        %v1583 = vadd.f32 %v1582, 1e-05
        %v1584 = vrsqrt.pop %v1583
        %v1585 = vmul.f32 %v1584, %v1583
        %v1586 = vmul.f32 %v1585, %v1584
        %v1587 = vmul.f32 0.5, %v1586
        %v1588 = vsub.f32 1.5, %v1587
        %v1589 = vmul.f32 %v1584, %v1588
        %vm1590 = vweird.f32 %v1583
        %vm1591 = vweird.f32 %v1584
        %vm1592 = vmor %vm1590, %vm1591
        %v1593 = vsel %vm1592, %v1584, %v1589
        %v1594 = vmul.f32 %v1577, %v1593
        %v1596 = vperm.slane %v1570, 0
        %v1598 = vmul.f32 %v1594, %v1596
        %v1600 = vperm.slane %v1572, 0
        %v1602 = vadd.f32 %v1598, %v1600
        %v1603 = vpack.c.bf16 %v1602, %v1602
        %s1604 = scalar_lea.vmem %s6, 16
        %v1605 = vld [vmem:[%s1604] sm:$0xf]
        %v1606 = vld [vmem:[%s1604 + $0x4] sm:$0xf]
        %v1607 = vld [vmem:[%s1604 + $0x8] sm:$0xf]
        %v1608 = vld [vmem:[%s1604 + $0xc] sm:$0xf]
        %s1609 = scalar_lea.vmem %s7, 1
        %v1610 = vld [vmem:[%s1609] sm:$0x1]
        %v1612 = vperm.slane %v1610, 0
        %v1618 = vunpack.c.l.b16 %v1605
        %v1619 = vunpack.c.l.b16 %v1606
        %v1620 = vunpack.c.l.b16 %v1607
        %v1621 = vunpack.c.l.b16 %v1608
        %v1622 = vpack.c.b16 %v1619, %v1618
        %v1623 = vpack.c.b16 %v1621, %v1620
        %v1627 = vsel %vm629, %v1603, 0
        %1629 = vmatpush.bf16.msra.mxu0 0
        %1630 = vmatpush.bf16.msra.mxu0 0
        %1631 = vmatpush.bf16.msra.mxu0 0
        %1632 = vmatpush.bf16.msra.mxu0 0
        %1633 = vmatpush.bf16.msra.mxu0 0
        %1634 = vmatpush.bf16.msra.mxu0 0
        %1635 = vmatpush.bf16.msra.mxu0 %v1623
        %1636 = vmatpush.bf16.msra.mxu0 %v1622
        %1637 = vmatmul.bf16.gmra.mxu0 %v1627
        %v1638 = vpop.f32.mrf.mxu0
        %v1639 = vadd.f32 %v1612, %v1638
        %v1640 = vpop.f32.mrf.mxu0
        %1641 = vdwg.mxu0
        %v1642 = vmax.f32 %v1639, 0.0
        %v1643 = vpack.c.bf16 %v1642, %v1642
        %s1644 = scalar_lea.vmem %s8, 64
        %v1645 = vld [vmem:[%s1644] sm:$0xf]
        %v1646 = vld [vmem:[%s1644 + $0x4] sm:$0xf]
        %v1647 = vld [vmem:[%s1644 + $0x8] sm:$0xf]
        %v1648 = vld [vmem:[%s1644 + $0xc] sm:$0xf]
        %v1649 = vld [vmem:[%s1644 + $0x10] sm:$0xf]
        %v1650 = vld [vmem:[%s1644 + $0x14] sm:$0xf]
        %v1651 = vld [vmem:[%s1644 + $0x18] sm:$0xf]
        %v1652 = vld [vmem:[%s1644 + $0x1c] sm:$0xf]
        %v1653 = vld [vmem:[%s1644 + $0x20] sm:$0xf]
        %v1654 = vld [vmem:[%s1644 + $0x24] sm:$0xf]
        %v1655 = vld [vmem:[%s1644 + $0x28] sm:$0xf]
        %v1656 = vld [vmem:[%s1644 + $0x2c] sm:$0xf]
        %v1657 = vld [vmem:[%s1644 + $0x30] sm:$0xf]
        %v1658 = vld [vmem:[%s1644 + $0x34] sm:$0xf]
        %v1659 = vld [vmem:[%s1644 + $0x38] sm:$0xf]
        %v1660 = vld [vmem:[%s1644 + $0x3c] sm:$0xf]
        %s1661 = scalar_lea.vmem %s9, 1
        %v1662 = vld [vmem:[%s1661] sm:$0x1]
        %v1664 = vperm.slane %v1662, 0
        %v1682 = vunpack.c.l.b16 %v1645
        %v1683 = vunpack.c.l.b16 %v1646
        %v1684 = vunpack.c.l.b16 %v1647
        %v1685 = vunpack.c.l.b16 %v1648
        %v1686 = vunpack.c.l.b16 %v1649
        %v1687 = vunpack.c.l.b16 %v1650
        %v1688 = vunpack.c.l.b16 %v1651
        %v1689 = vunpack.c.l.b16 %v1652
        %v1690 = vunpack.c.l.b16 %v1653
        %v1691 = vunpack.c.l.b16 %v1654
        %v1692 = vunpack.c.l.b16 %v1655
        %v1693 = vunpack.c.l.b16 %v1656
        %v1694 = vunpack.c.l.b16 %v1657
        %v1695 = vunpack.c.l.b16 %v1658
        %v1696 = vunpack.c.l.b16 %v1659
        %v1697 = vunpack.c.l.b16 %v1660
        %v1698 = vpack.c.b16 %v1683, %v1682
        %v1699 = vpack.c.b16 %v1685, %v1684
        %v1700 = vpack.c.b16 %v1687, %v1686
        %v1701 = vpack.c.b16 %v1689, %v1688
        %v1702 = vpack.c.b16 %v1691, %v1690
        %v1703 = vpack.c.b16 %v1693, %v1692
        %v1704 = vpack.c.b16 %v1695, %v1694
        %v1705 = vpack.c.b16 %v1697, %v1696
        %1714 = vmatpush.bf16.msra.mxu0 %v1705
        %1715 = vmatpush.bf16.msra.mxu0 %v1704
        %1716 = vmatpush.bf16.msra.mxu0 %v1703
        %1717 = vmatpush.bf16.msra.mxu0 %v1702
        %1718 = vmatpush.bf16.msra.mxu0 %v1701
        %1719 = vmatpush.bf16.msra.mxu0 %v1700
        %1720 = vmatpush.bf16.msra.mxu0 %v1699
        %1721 = vmatpush.bf16.msra.mxu0 %v1698
        %1722 = vmatmul.bf16.gmra.mxu0 %v1643
        %v1723 = vpop.f32.mrf.mxu0
        %v1724 = vadd.f32 %v1664, %v1723
        %v1725 = vpop.f32.mrf.mxu0
        %1726 = vdwg.mxu0
        %v1727 = vadd.f32 %v1568, %v1724
        %v1728 = vld [vmem:[%s14] sm:$0x1]
        %v1729 = vld [vmem:[%s15] sm:$0x1]
        %v1730 = vsel %vm629, %v1727, 0.0
        %1731 = vadd.xlane.f32.xlu0 %v1730
        %v1732 = vpop.xlane.xlu0 %1731
        %v1733 = vmul.f32 %v1732, %v659
        %v1734 = vsub.f32 %v1727, %v1733
        %v1735 = vmul.f32 %v1734, %v1734
        %v1736 = vsel %vm629, %v1735, 0.0
        %1737 = vadd.xlane.f32.xlu0 %v1736
        %v1738 = vpop.xlane.xlu0 %1737
        %v1739 = vmul.f32 %v1738, %v659
        %v1740 = vadd.f32 %v1739, 1e-05
        %v1741 = vrsqrt.pop %v1740
        %v1742 = vmul.f32 %v1741, %v1740
        %v1743 = vmul.f32 %v1742, %v1741
        %v1744 = vmul.f32 0.5, %v1743
        %v1745 = vsub.f32 1.5, %v1744
        %v1746 = vmul.f32 %v1741, %v1745
        %vm1747 = vweird.f32 %v1740
        %vm1748 = vweird.f32 %v1741
        %vm1749 = vmor %vm1747, %vm1748
        %v1750 = vsel %vm1749, %v1741, %v1746
        %v1751 = vmul.f32 %v1734, %v1750
        %v1753 = vperm.slane %v1728, 0
        %v1755 = vmul.f32 %v1751, %v1753
        %v1757 = vperm.slane %v1729, 0
        %v1759 = vadd.f32 %v1755, %v1757
        %v1760 = vld [vmem:[%s16] sm:$0x1]
        %v1762 = vperm.slane %v1760, 0
        %v1764 = vmul.f32 %v1759, %v1762
        %v1765 = vsel %vm629, %v1764, 0.0
        %1766 = vadd.xlane.f32.xlu0 %v1765
        %v1767 = vpop.xlane.xlu0 %1766
        %v1768 = vld [vmem:[#allocation2] sm:$0x1]
        %v1770 = vperm.slane %v1768, 0
        %v1772 = vadd.f32 %v1767, %v1770
        %v1773 = vadd.f32 %v1772, %v647
        %vm1774 = vcmask 7168
        %v1775 = vsel %vm1774, %v1773, -inf
        %v1776 = vrot.slane %v1775, 4
        %v1777 = vmax.f32 %v1775, %v1776
        %v1778 = vrot.slane %v1777, 2
        %v1779 = vmax.f32 %v1777, %v1778
        %v1780 = vrot.slane %v1779, 1
        %v1781 = vmax.f32 %v1779, %v1780
        %v1782 = vsub.f32 %v1773, %v1781
        %v1783 = vmul.f32 %v1782, 1.442695
        %v1784 = vpow.pop %v1783
        %v1785 = vsel %vm1774, %v1784, 0.0
        %v1786 = vrot.slane %v1785, 4
        %v1787 = vadd.f32 %v1785, %v1786
        %v1788 = vrot.slane %v1787, 2
        %v1789 = vadd.f32 %v1787, %v1788
        %v1790 = vrot.slane %v1789, 1
        %v1791 = vadd.f32 %v1789, %v1790
        %v1792 = vrcp.pop %v1791
        %v1793 = vmul.f32 %v1784, %v1792
        %v1794 = vmul.f32 %v1793, %v636
        %1796 = vset.pattern.permute.xlu0 0
        %1797 = vperm.xlu0 %1796, %v1794
        %v1798 = vpop.permute.xlu0 %1797
        %v1800 = vmul.f32 %v1759, %v1798
        %v1801 = vsel %vm629, %v1800, 0.0
        %v1802 = vrot.slane %v1801, 4
        %v1803 = vadd.f32 %v1801, %v1802
        %v1804 = vrot.slane %v1803, 2
        %v1805 = vadd.f32 %v1803, %v1804
        %v1806 = vrot.slane %v1805, 1
        %v1807 = vadd.f32 %v1805, %v1806
        %v1808 = vpack.c.bf16 %v1807, %v1807
        %v1809 = vld [vmem:[%s18] sm:$0xf]
        %v1810 = vld [vmem:[%s18 + $0x4] sm:$0xf]
        %v1811 = vld [vmem:[%s18 + $0x8] sm:$0xf]
        %v1812 = vld [vmem:[%s18 + $0xc] sm:$0xf]
        %v1813 = vld [vmem:[%s19] sm:$0x1]
        %v1818 = vunpack.c.l.b16 %v1809
        %v1819 = vunpack.c.l.b16 %v1810
        %v1820 = vunpack.c.l.b16 %v1811
        %v1821 = vunpack.c.l.b16 %v1812
        %v1822 = vpack.c.b16 %v1819, %v1818
        %v1823 = vpack.c.b16 %v1821, %v1820
        %v1827 = vsel %vm629, %v1808, 0
        %1829 = vmatpush.bf16.msra.mxu0 0
        %1830 = vmatpush.bf16.msra.mxu0 0
        %1831 = vmatpush.bf16.msra.mxu0 0
        %1832 = vmatpush.bf16.msra.mxu0 0
        %1833 = vmatpush.bf16.msra.mxu0 0
        %1834 = vmatpush.bf16.msra.mxu0 0
        %1835 = vmatpush.bf16.msra.mxu0 %v1823
        %1836 = vmatpush.bf16.msra.mxu0 %v1822
        %1837 = vmatmul.bf16.gmra.mxu0 %v1827
        %v1838 = vpop.f32.mrf.mxu0
        %v1839 = vadd.f32 %v1813, %v1838
        %v1840 = vpop.f32.mrf.mxu0
        %1841 = vdwg.mxu0
        %1842 = vst [vmem:[%s621] sm:$0x1] %v1839
        %s1843 = sand.u32 %s469, 1
        %s1844 = scalar_lea.sflag [#allocation4], %s1843
        %s1845 = sand.u32 %s469, 1
        %s1846 = scalar_lea.vmem [#allocation3], %s1845
        // Predicated region
        $region101: #{tpu_custom_call.1} parent=99 // pred_check
          %p1847 = pneg %p479
        $region102: #{tpu_custom_call.1} parent=99 // pred_check_branch
          %1849 = sbr.rel (%p1847) target = $region104
        $region103: #{tpu_custom_call.1} parent=99 // pred_region
          %1851 = vsyncadd %s1844, 0
          %s1852 = scalar_lea.hbm %s20, %s36
          %s1854 = sshll.u32 %s1846, 4
          %s1855 = int_to_ptr.vmem [resolvable:$true] %s1854
          %s1856 = sshll.u32 %s1852, 4
          %s1857 = int_to_ptr.hbm [resolvable:$true] %s1856
          %1859 = dma.vmem_to_hbm [thread:$0]  %s1855, 16, %s1857, %s1844
        $region104: #{tpu_custom_call.1} parent=99 // pred_fallthru
          _
      $region100: #{tpu_custom_call.1} parent=5 // pred_fallthru
        _
      %p1860 = scmp.le.s32.totalorder 2, %s31
      // Predicated region
      $region105: #{tpu_custom_call.1} parent=5 // pred_check
        %p1861 = pneg %p1860
      $region106: #{tpu_custom_call.1} parent=5 // pred_check_branch
        %1863 = sbr.rel (%p1861) target = $region108
      $region107: #{tpu_custom_call.1} parent=5 // pred_region
        %s1864 = ssub.s32 %s31, 2
        // Predicated region
        $region109: #{tpu_custom_call.1} parent=107 // pred_check
          %p1865 = pneg %p485
        $region110: #{tpu_custom_call.1} parent=107 // pred_check_branch
          %1867 = sbr.rel (%p1865) target = $region112
        $region111: #{tpu_custom_call.1} parent=107 // pred_region
          %s1868 = sand.u32 %s470, 1
          %s1869 = scalar_lea.sflag [#allocation4], %s1868
          %s1870 = sand.u32 %s470, 1
          %s1871 = scalar_lea.vmem [#allocation3], %s1870
          %1873 = dma.done %s1869, 16
        $region112: #{tpu_custom_call.1} parent=107 // pred_fallthru
          _
      $region108: #{tpu_custom_call.1} parent=5 // pred_fallthru
        _
    $region6: #{tpu_custom_call.1} parent=1 // loop_footer
      %s35 = sadd.s32 1, %s31
    $region7: #{tpu_custom_call.1} parent=1 // loop_footer_branch
      %30 = sbr.rel target = $region3
    $region8: #{tpu_custom_call.1} parent=1 // loop_exit
      _
    %1874 = vsyncpa [#allocation4], 1
    %s1875 = scalar_lea.sflag [#allocation4], 1
    %1876 = vsyncpa %s1875, 1

</llo_original>
